<compile_context>
chip_gen: v6e
topology: v6e:2x2x1
jax: 0.10.0
libtpu: 0.0.40
codegen_flags: <defaults>
</compile_context>

<pallas_src>
import jax
import jax.numpy as jnp
from jax import lax
from jax.experimental import pallas as pl
from jax.experimental.pallas import tpu as pltpu


def _round_up(x, m):
    return (x + m - 1) // m * m


def grader_kernel(x_ref, mask_ref, wih_ref, whh_ref, bih_ref, bhh_ref,
                  w1_ref, b1_ref, w2_ref, b2_ref, out_ref, h_ref):
    """One (batch-tile, time-tile) grid step.

    x_ref    : (TL*TB, D)   bf16  time-major rows (t0 all b, t1 all b, ...)
    mask_ref : (TL*TB, 1)   f32   1.0 while t < seq_len, else 0.0
    wih_ref  : (D,  3*Hp)   bf16  gates [r|z|n], each padded to Hp lanes
    whh_ref  : (Hp, 3*Hp)   bf16
    bih/bhh  : (1, 3*Hp)    f32
    w1/b1    : (Hp, LHp)/(1, LHp) f32
    w2/b2    : (LHp, OP)/(1, OP)  f32
    out_ref  : (TB, OP)     f32   column 0 = result (lane-dense store)
    h_ref    : (TB, Hp)     f32   VMEM scratch, persists across the time axis
    """
    li = pl.program_id(1)
    R, _ = x_ref.shape
    TB, Hp = h_ref.shape
    TL = R // TB

    @pl.when(li == 0)
    def _init():
        h_ref[...] = jnp.zeros_like(h_ref)

    # ---- hoisted input projection: one matmul for the whole time tile ----
    gi_all = (jnp.dot(x_ref[...], wih_ref[...],
                      preferred_element_type=jnp.float32)
              + bih_ref[...])                              # (TL*TB, 3Hp) f32
    mask = mask_ref[...]                                   # (TL*TB, 1)   f32
    whh = whh_ref[...]
    bhh = bhh_ref[...]

    # ---- recurrence: only h @ W_hh is serially dependent ------------------
    h = h_ref[...]                                         # (TB, Hp) f32
    for t in range(TL):                                    # static unroll
        lo = t * TB
        gi = gi_all[lo:lo + TB, :]                         # (TB, 3Hp)
        m = mask[lo:lo + TB, :]                            # (TB, 1)
        gh = jnp.dot(h.astype(whh.dtype), whh,
                     preferred_element_type=jnp.float32) + bhh
        r = jax.nn.sigmoid(gi[:, 0 * Hp:1 * Hp] + gh[:, 0 * Hp:1 * Hp])
        z = jax.nn.sigmoid(gi[:, 1 * Hp:2 * Hp] + gh[:, 1 * Hp:2 * Hp])
        n = jnp.tanh(gi[:, 2 * Hp:3 * Hp] + r * gh[:, 2 * Hp:3 * Hp])
        h_new = (1.0 - z) * n + z * h
        # pack_padded_sequence(enforce_sorted=False): freeze h once t >= len.
        h = h + m * (h_new - h)
    h_ref[...] = h

    # ---- MLP head: only on the last time tile ------------------------------
    @pl.when(li == pl.num_programs(1) - 1)
    def _head():
        y1 = jnp.maximum(
            jnp.dot(h, w1_ref[...], preferred_element_type=jnp.float32)
            + b1_ref[...], 0.0)
        y2 = jax.nn.sigmoid(
            jnp.dot(y1, w2_ref[...], preferred_element_type=jnp.float32)
            + b2_ref[...])
        out_ref[...] = y2 * 6.0


def grader_forward(params, c_datas, d_datas, seq_lengths, d_feat,
                   hidden_dim, linear_hidden_dim, *, tb=8, tl=8):
    # --- glue: embedding lookup + concat (same as the PyTorch module) ---
    embeds = [jnp.take(params["emb"][f], d_datas[:, :, i], axis=0)
              for i, f in enumerate(d_feat)]
    inputs = jnp.concatenate([c_datas] + embeds, axis=-1)        # (B, L, D)
    B, L, D = inputs.shape
    H, LH = hidden_dim, linear_hidden_dim

    LANE = 128
    OUTP = 128                                    # lane-dense output slab width
    Hp = _round_up(H, LANE)
    LHp = _round_up(LH, LANE)
    Bp = _round_up(B, tb)
    Lp = _round_up(L, tl)
    nb, nl = Bp // tb, Lp // tl

    # Time-major, padded, pre-tiled activations: (nl, nb, tl*tb, D), bf16.
    x = jnp.transpose(inputs, (1, 0, 2)).astype(jnp.float32)     # (L, B, D)
    x = jnp.pad(x, ((0, Lp - L), (0, Bp - B), (0, 0)))
    x = x.reshape(nl, tl, nb, tb, D).transpose(0, 2, 1, 3, 4)
    x = x.reshape(nl, nb, tl * tb, D).astype(jnp.bfloat16)

    # Precomputed sequence-length masks (padded rows/steps -> 0 -> frozen h).
    lens = jnp.pad(seq_lengths.astype(jnp.int32), (0, Bp - B))
    t_ids = jnp.arange(Lp, dtype=jnp.int32)
    mask = (t_ids[:, None] < lens[None, :]).astype(jnp.float32)  # (Lp, Bp)
    mask = mask.reshape(nl, tl, nb, tb).transpose(0, 2, 1, 3)
    mask = mask.reshape(nl, nb, tl * tb, 1)

    # Lane-align the gates: pad each [r|z|n] block to Hp columns (zeros).
    def pad_gates(w, axis):
        parts = []
        for g in range(3):
            p = lax.slice_in_dim(w, g * H, (g + 1) * H, axis=axis)
            pads = [(0, 0)] * w.ndim
            pads[axis] = (0, Hp - H)
            parts.append(jnp.pad(p, pads))
        return jnp.concatenate(parts, axis=axis)

    w_ih = pad_gates(params["w_ih"], 1).astype(jnp.bfloat16)           # (D, 3Hp)
    w_hh = jnp.pad(pad_gates(params["w_hh"], 1),
                   ((0, Hp - H), (0, 0))).astype(jnp.bfloat16)         # (Hp, 3Hp)
    b_ih = pad_gates(params["b_ih"], 1)                                # (1, 3Hp)
    b_hh = pad_gates(params["b_hh"], 1)                                # (1, 3Hp)
    w1 = jnp.pad(params["w1"], ((0, Hp - H), (0, LHp - LH)))           # (Hp, LHp)
    b1 = jnp.pad(params["b1"], ((0, 0), (0, LHp - LH)))                # (1, LHp)
    w2 = jnp.pad(params["w2"], ((0, LHp - LH), (0, OUTP - 1)))         # (LHp, OUTP)
    b2 = jnp.pad(params["b2"], ((0, 0), (0, OUTP - 1)))                # (1, OUTP)

    def const_spec(shape):
        return pl.BlockSpec(shape, lambda bi, li: (0,) * len(shape))

    grid_spec = pltpu.PrefetchScalarGridSpec(
        num_scalar_prefetch=0,
        grid=(nb, nl),
        in_specs=[
            pl.BlockSpec((None, None, tl * tb, D), lambda bi, li: (li, bi, 0, 0)),  # x
            pl.BlockSpec((None, None, tl * tb, 1), lambda bi, li: (li, bi, 0, 0)),  # mask
            const_spec((D, 3 * Hp)),          # w_ih
            const_spec((Hp, 3 * Hp)),         # w_hh
            const_spec((1, 3 * Hp)),          # b_ih
            const_spec((1, 3 * Hp)),          # b_hh
            const_spec((Hp, LHp)),            # w1
            const_spec((1, LHp)),             # b1
            const_spec((LHp, OUTP)),          # w2
            const_spec((1, OUTP)),            # b2
        ],
        out_specs=pl.BlockSpec((tb, OUTP), lambda bi, li: (bi, 0)),
        scratch_shapes=[pltpu.VMEM((tb, Hp), jnp.float32)],
    )

    out = pl.pallas_call(
        grader_kernel,
        out_shape=jax.ShapeDtypeStruct((Bp, OUTP), jnp.float32),
        grid_spec=grid_spec,
        compiler_params=pltpu.CompilerParams(
            dimension_semantics=("parallel", "arbitrary")),
    )(x, mask, w_ih, w_hh, b_ih, b_hh, w1, b1, w2, b2)

    return out[:B, :1]


def init_params(key, c_feat, d_feat, class_size_dict, embedding_size,
                hidden_dim, linear_hidden_dim):
    input_dim = len(c_feat) + len(d_feat) * embedding_size
    keys = jax.random.split(key, 10 + len(d_feat))
    s = 0.1
    params = {
        "w_ih": s * jax.random.normal(keys[0], (input_dim, 3 * hidden_dim), jnp.float32),
        "w_hh": s * jax.random.normal(keys[1], (hidden_dim, 3 * hidden_dim), jnp.float32),
        "b_ih": s * jax.random.normal(keys[2], (1, 3 * hidden_dim), jnp.float32),
        "b_hh": s * jax.random.normal(keys[3], (1, 3 * hidden_dim), jnp.float32),
        "w1": s * jax.random.normal(keys[4], (hidden_dim, linear_hidden_dim), jnp.float32),
        "b1": s * jax.random.normal(keys[5], (1, linear_hidden_dim), jnp.float32),
        "w2": s * jax.random.normal(keys[6], (linear_hidden_dim, 1), jnp.float32),
        "b2": s * jax.random.normal(keys[7], (1, 1), jnp.float32),
        "emb": {f: s * jax.random.normal(keys[8 + i],
                                         (class_size_dict[f], embedding_size),
                                         jnp.float32)
                for i, f in enumerate(d_feat)},
    }
    return params


if __name__ == "__main__":
    # Small, forward-consistent shapes.
    B, L = 2, 8
    hidden_dim = 32
    linear_hidden_dim = 16
    embedding_size = 8
    c_feat = [f"c{i}" for i in range(8)]                  # 8 continuous features
    d_feat = ["d0", "d1", "d2"]                           # 3 discrete features
    class_size_dict = {"d0": 10, "d1": 7, "d2": 5}
    # input_dim = 8 + 3*8 = 32

    key = jax.random.PRNGKey(0)
    kp, kc, kd = jax.random.split(key, 3)

    params = init_params(kp, c_feat, d_feat, class_size_dict, embedding_size,
                         hidden_dim, linear_hidden_dim)

    c_datas = jax.random.normal(kc, (B, L, len(c_feat)), jnp.float32)
    d_datas = jnp.stack(
        [jax.random.randint(jax.random.fold_in(kd, i), (B, L), 0, class_size_dict[f])
         for i, f in enumerate(d_feat)], axis=-1).astype(jnp.int32)     # (B, L, 3)
    seq_lengths = jnp.array([L, 5], dtype=jnp.int32)                    # variable lengths

    out = grader_forward(params, c_datas, d_datas, seq_lengths, d_feat,
                         hidden_dim, linear_hidden_dim)
    out = jax.block_until_ready(out)
    assert out.shape == (B, 1)
    assert bool(jnp.all(jnp.isfinite(out)))
    assert bool(jnp.all((out >= 0.0) & (out <= 6.0)))
    print("KERNEL_OK")
</pallas_src>

<mosaic_0001>
module attributes {stable_mosaic.version = 11 : i64} {
  func.func @grader_kernel(%arg0: i32, %arg1: i32, %arg2: memref<1x1x64x32xbf16, #tpu.memory_space<vmem>>, %arg3: memref<1x1x64x1xf32, #tpu.memory_space<vmem>>, %arg4: memref<32x384xbf16, #tpu.memory_space<vmem>>, %arg5: memref<128x384xbf16, #tpu.memory_space<vmem>>, %arg6: memref<1x384xf32, #tpu.memory_space<vmem>>, %arg7: memref<1x384xf32, #tpu.memory_space<vmem>>, %arg8: memref<128x128xf32, #tpu.memory_space<vmem>>, %arg9: memref<1x128xf32, #tpu.memory_space<vmem>>, %arg10: memref<128x128xf32, #tpu.memory_space<vmem>>, %arg11: memref<1x128xf32, #tpu.memory_space<vmem>>, %arg12: memref<8x128xf32, #tpu.memory_space<vmem>>, %arg13: memref<8x128xf32, #tpu.memory_space<vmem>>) attributes {dimension_semantics = [#tpu.dimension_semantics<parallel>, #tpu.dimension_semantics<arbitrary>], iteration_bounds = array<i64: 1, 1>, scalar_prefetch = 0 : i64, scratch_operands = 1 : i64, tpu.core_type = #tpu.core_type<tc>, window_params = [{transform_indices = @transform_0, window_bounds = array<i64: 1, 1, 64, 32>}, {transform_indices = @transform_1, window_bounds = array<i64: 1, 1, 64, 1>}, {pipeline_mode = #tpu.pipeline_mode<synchronous>, transform_indices = @transform_2, window_bounds = array<i64: 32, 384>}, {pipeline_mode = #tpu.pipeline_mode<synchronous>, transform_indices = @transform_3, window_bounds = array<i64: 128, 384>}, {pipeline_mode = #tpu.pipeline_mode<synchronous>, transform_indices = @transform_4, window_bounds = array<i64: 1, 384>}, {pipeline_mode = #tpu.pipeline_mode<synchronous>, transform_indices = @transform_5, window_bounds = array<i64: 1, 384>}, {pipeline_mode = #tpu.pipeline_mode<synchronous>, transform_indices = @transform_6, window_bounds = array<i64: 128, 128>}, {pipeline_mode = #tpu.pipeline_mode<synchronous>, transform_indices = @transform_7, window_bounds = array<i64: 1, 128>}, {pipeline_mode = #tpu.pipeline_mode<synchronous>, transform_indices = @transform_8, window_bounds = array<i64: 128, 128>}, {pipeline_mode = #tpu.pipeline_mode<synchronous>, transform_indices = @transform_9, window_bounds = array<i64: 1, 128>}, {transform_indices = @transform_10, window_bounds = array<i64: 8, 128>}]} {
    %c0_i32 = arith.constant 0 : i32
    %0 = arith.cmpi eq, %arg1, %c0_i32 : i32
    %1 = arith.extui %0 : i1 to i32
    %c0_i32_0 = arith.constant 0 : i32
    %2 = arith.cmpi ne, %1, %c0_i32_0 : i32
    scf.if %2 {
      %cst_54 = arith.constant 0.000000e+00 : f32
      %307 = vector.broadcast %cst_54 : f32 to vector<8x128xf32>
      %c0_55 = arith.constant 0 : index
      %c0_56 = arith.constant 0 : index
      %308 = vector.load %arg13[%c0_55, %c0_56] : memref<8x128xf32, #tpu.memory_space<vmem>>, vector<8x128xf32>
      tpu.vector_store %arg13[%c0_55, %c0_56], %307 {strides = array<i32>} : memref<8x128xf32, #tpu.memory_space<vmem>>, vector<8x128xf32>,
    } else {
    }
    %c0 = arith.constant 0 : index
    %c0_1 = arith.constant 0 : index
    %c0_2 = arith.constant 0 : index
    %c0_3 = arith.constant 0 : index
    %3 = vector.load %arg2[%c0, %c0_1, %c0_2, %c0_3] : memref<1x1x64x32xbf16, #tpu.memory_space<vmem>>, vector<1x1x64x32xbf16>
    %4 = vector.shape_cast %3 : vector<1x1x64x32xbf16> to vector<64x32xbf16>
    %c0_4 = arith.constant 0 : index
    %c0_5 = arith.constant 0 : index
    %5 = vector.load %arg4[%c0_4, %c0_5] : memref<32x384xbf16, #tpu.memory_space<vmem>>, vector<32x384xbf16>
    %cst = arith.constant dense<0.000000e+00> : vector<64x384xf32>
    %6 = tpu.matmul %4, %5, %cst {dimension_numbers = #tpu.dot_dimension_numbers<[1], [0], [0], [1], [0, 0, 1, 1], [], []>} : vector<64x32xbf16>, vector<32x384xbf16>, vector<64x384xf32> -> vector<64x384xf32>
    %c0_6 = arith.constant 0 : index
    %c0_7 = arith.constant 0 : index
    %7 = vector.load %arg6[%c0_6, %c0_7] : memref<1x384xf32, #tpu.memory_space<vmem>>, vector<1x384xf32>
    %8 = vector.broadcast %7 : vector<1x384xf32> to vector<64x384xf32>
    %9 = arith.addf %6, %8 : vector<64x384xf32>
    %c0_8 = arith.constant 0 : index
    %c0_9 = arith.constant 0 : index
    %c0_10 = arith.constant 0 : index
    %c0_11 = arith.constant 0 : index
    %10 = vector.load %arg3[%c0_8, %c0_9, %c0_10, %c0_11] : memref<1x1x64x1xf32, #tpu.memory_space<vmem>>, vector<1x1x64x1xf32>
    %11 = vector.shape_cast %10 : vector<1x1x64x1xf32> to vector<64x1xf32>
    %c0_12 = arith.constant 0 : index
    %c0_13 = arith.constant 0 : index
    %12 = vector.load %arg5[%c0_12, %c0_13] : memref<128x384xbf16, #tpu.memory_space<vmem>>, vector<128x384xbf16>
    %c0_14 = arith.constant 0 : index
    %c0_15 = arith.constant 0 : index
    %13 = vector.load %arg7[%c0_14, %c0_15] : memref<1x384xf32, #tpu.memory_space<vmem>>, vector<1x384xf32>
    %c0_16 = arith.constant 0 : index
    %c0_17 = arith.constant 0 : index
    %14 = vector.load %arg13[%c0_16, %c0_17] : memref<8x128xf32, #tpu.memory_space<vmem>>, vector<8x128xf32>
    %15 = vector.extract_strided_slice %9 {offsets = [0, 0], sizes = [8, 384], strides = [1, 1]} : vector<64x384xf32> to vector<8x384xf32>
    %16 = vector.extract_strided_slice %11 {offsets = [0, 0], sizes = [8, 1], strides = [1, 1]} : vector<64x1xf32> to vector<8x1xf32>
    %17 = arith.truncf %14 : vector<8x128xf32> to vector<8x128xbf16>
    %cst_18 = arith.constant dense<0.000000e+00> : vector<8x384xf32>
    %18 = tpu.matmul %17, %12, %cst_18 {dimension_numbers = #tpu.dot_dimension_numbers<[1], [0], [0], [1], [0, 0, 1, 1], [], []>} : vector<8x128xbf16>, vector<128x384xbf16>, vector<8x384xf32> -> vector<8x384xf32>
    %19 = vector.broadcast %13 : vector<1x384xf32> to vector<8x384xf32>
    %20 = arith.addf %18, %19 : vector<8x384xf32>
    %21 = vector.extract_strided_slice %15 {offsets = [0, 0], sizes = [8, 128], strides = [1, 1]} : vector<8x384xf32> to vector<8x128xf32>
    %22 = vector.extract_strided_slice %20 {offsets = [0, 0], sizes = [8, 128], strides = [1, 1]} : vector<8x384xf32> to vector<8x128xf32>
    %23 = arith.addf %21, %22 : vector<8x128xf32>
    %24 = arith.negf %23 : vector<8x128xf32>
    %25 = math.exp %24 : vector<8x128xf32>
    %cst_19 = arith.constant 1.000000e+00 : f32
    %26 = vector.broadcast %cst_19 : f32 to vector<8x128xf32>
    %27 = arith.addf %26, %25 : vector<8x128xf32>
    %28 = arith.divf %26, %27 : vector<8x128xf32>
    %29 = vector.extract_strided_slice %15 {offsets = [0, 128], sizes = [8, 128], strides = [1, 1]} : vector<8x384xf32> to vector<8x128xf32>
    %30 = vector.extract_strided_slice %20 {offsets = [0, 128], sizes = [8, 128], strides = [1, 1]} : vector<8x384xf32> to vector<8x128xf32>
    %31 = arith.addf %29, %30 : vector<8x128xf32>
    %32 = arith.negf %31 : vector<8x128xf32>
    %33 = math.exp %32 : vector<8x128xf32>
    %cst_20 = arith.constant 1.000000e+00 : f32
    %34 = vector.broadcast %cst_20 : f32 to vector<8x128xf32>
    %35 = arith.addf %34, %33 : vector<8x128xf32>
    %36 = arith.divf %34, %35 : vector<8x128xf32>
    %37 = vector.extract_strided_slice %15 {offsets = [0, 256], sizes = [8, 128], strides = [1, 1]} : vector<8x384xf32> to vector<8x128xf32>
    %38 = vector.extract_strided_slice %20 {offsets = [0, 256], sizes = [8, 128], strides = [1, 1]} : vector<8x384xf32> to vector<8x128xf32>
    %39 = arith.mulf %28, %38 : vector<8x128xf32>
    %40 = arith.addf %37, %39 : vector<8x128xf32>
    %41 = math.tanh %40 : vector<8x128xf32>
    %cst_21 = arith.constant 1.000000e+00 : f32
    %42 = vector.broadcast %cst_21 : f32 to vector<8x128xf32>
    %43 = arith.subf %42, %36 : vector<8x128xf32>
    %44 = arith.mulf %43, %41 : vector<8x128xf32>
    %45 = arith.mulf %36, %14 : vector<8x128xf32>
    %46 = arith.addf %44, %45 : vector<8x128xf32>
    %47 = arith.subf %46, %14 : vector<8x128xf32>
    %48 = vector.broadcast %16 : vector<8x1xf32> to vector<8x128xf32>
    %49 = arith.mulf %48, %47 : vector<8x128xf32>
    %50 = arith.addf %14, %49 : vector<8x128xf32>
    %51 = vector.extract_strided_slice %9 {offsets = [8, 0], sizes = [8, 384], strides = [1, 1]} : vector<64x384xf32> to vector<8x384xf32>
    %52 = vector.extract_strided_slice %11 {offsets = [8, 0], sizes = [8, 1], strides = [1, 1]} : vector<64x1xf32> to vector<8x1xf32>
    %53 = arith.truncf %50 : vector<8x128xf32> to vector<8x128xbf16>
    %cst_22 = arith.constant dense<0.000000e+00> : vector<8x384xf32>
    %54 = tpu.matmul %53, %12, %cst_22 {dimension_numbers = #tpu.dot_dimension_numbers<[1], [0], [0], [1], [0, 0, 1, 1], [], []>} : vector<8x128xbf16>, vector<128x384xbf16>, vector<8x384xf32> -> vector<8x384xf32>
    %55 = vector.broadcast %13 : vector<1x384xf32> to vector<8x384xf32>
    %56 = arith.addf %54, %55 : vector<8x384xf32>
    %57 = vector.extract_strided_slice %51 {offsets = [0, 0], sizes = [8, 128], strides = [1, 1]} : vector<8x384xf32> to vector<8x128xf32>
    %58 = vector.extract_strided_slice %56 {offsets = [0, 0], sizes = [8, 128], strides = [1, 1]} : vector<8x384xf32> to vector<8x128xf32>
    %59 = arith.addf %57, %58 : vector<8x128xf32>
    %60 = arith.negf %59 : vector<8x128xf32>
    %61 = math.exp %60 : vector<8x128xf32>
    %cst_23 = arith.constant 1.000000e+00 : f32
    %62 = vector.broadcast %cst_23 : f32 to vector<8x128xf32>
    %63 = arith.addf %62, %61 : vector<8x128xf32>
    %64 = arith.divf %62, %63 : vector<8x128xf32>
    %65 = vector.extract_strided_slice %51 {offsets = [0, 128], sizes = [8, 128], strides = [1, 1]} : vector<8x384xf32> to vector<8x128xf32>
    %66 = vector.extract_strided_slice %56 {offsets = [0, 128], sizes = [8, 128], strides = [1, 1]} : vector<8x384xf32> to vector<8x128xf32>
    %67 = arith.addf %65, %66 : vector<8x128xf32>
    %68 = arith.negf %67 : vector<8x128xf32>
    %69 = math.exp %68 : vector<8x128xf32>
    %cst_24 = arith.constant 1.000000e+00 : f32
    %70 = vector.broadcast %cst_24 : f32 to vector<8x128xf32>
    %71 = arith.addf %70, %69 : vector<8x128xf32>
    %72 = arith.divf %70, %71 : vector<8x128xf32>
    %73 = vector.extract_strided_slice %51 {offsets = [0, 256], sizes = [8, 128], strides = [1, 1]} : vector<8x384xf32> to vector<8x128xf32>
    %74 = vector.extract_strided_slice %56 {offsets = [0, 256], sizes = [8, 128], strides = [1, 1]} : vector<8x384xf32> to vector<8x128xf32>
    %75 = arith.mulf %64, %74 : vector<8x128xf32>
    %76 = arith.addf %73, %75 : vector<8x128xf32>
    %77 = math.tanh %76 : vector<8x128xf32>
    %cst_25 = arith.constant 1.000000e+00 : f32
    %78 = vector.broadcast %cst_25 : f32 to vector<8x128xf32>
    %79 = arith.subf %78, %72 : vector<8x128xf32>
    %80 = arith.mulf %79, %77 : vector<8x128xf32>
    %81 = arith.mulf %72, %50 : vector<8x128xf32>
    %82 = arith.addf %80, %81 : vector<8x128xf32>
    %83 = arith.subf %82, %50 : vector<8x128xf32>
    %84 = vector.broadcast %52 : vector<8x1xf32> to vector<8x128xf32>
    %85 = arith.mulf %84, %83 : vector<8x128xf32>
    %86 = arith.addf %50, %85 : vector<8x128xf32>
    %87 = vector.extract_strided_slice %9 {offsets = [16, 0], sizes = [8, 384], strides = [1, 1]} : vector<64x384xf32> to vector<8x384xf32>
    %88 = vector.extract_strided_slice %11 {offsets = [16, 0], sizes = [8, 1], strides = [1, 1]} : vector<64x1xf32> to vector<8x1xf32>
    %89 = arith.truncf %86 : vector<8x128xf32> to vector<8x128xbf16>
    %cst_26 = arith.constant dense<0.000000e+00> : vector<8x384xf32>
    %90 = tpu.matmul %89, %12, %cst_26 {dimension_numbers = #tpu.dot_dimension_numbers<[1], [0], [0], [1], [0, 0, 1, 1], [], []>} : vector<8x128xbf16>, vector<128x384xbf16>, vector<8x384xf32> -> vector<8x384xf32>
    %91 = vector.broadcast %13 : vector<1x384xf32> to vector<8x384xf32>
    %92 = arith.addf %90, %91 : vector<8x384xf32>
    %93 = vector.extract_strided_slice %87 {offsets = [0, 0], sizes = [8, 128], strides = [1, 1]} : vector<8x384xf32> to vector<8x128xf32>
    %94 = vector.extract_strided_slice %92 {offsets = [0, 0], sizes = [8, 128], strides = [1, 1]} : vector<8x384xf32> to vector<8x128xf32>
    %95 = arith.addf %93, %94 : vector<8x128xf32>
    %96 = arith.negf %95 : vector<8x128xf32>
    %97 = math.exp %96 : vector<8x128xf32>
    %cst_27 = arith.constant 1.000000e+00 : f32
    %98 = vector.broadcast %cst_27 : f32 to vector<8x128xf32>
    %99 = arith.addf %98, %97 : vector<8x128xf32>
    %100 = arith.divf %98, %99 : vector<8x128xf32>
    %101 = vector.extract_strided_slice %87 {offsets = [0, 128], sizes = [8, 128], strides = [1, 1]} : vector<8x384xf32> to vector<8x128xf32>
    %102 = vector.extract_strided_slice %92 {offsets = [0, 128], sizes = [8, 128], strides = [1, 1]} : vector<8x384xf32> to vector<8x128xf32>
    %103 = arith.addf %101, %102 : vector<8x128xf32>
    %104 = arith.negf %103 : vector<8x128xf32>
    %105 = math.exp %104 : vector<8x128xf32>
    %cst_28 = arith.constant 1.000000e+00 : f32
    %106 = vector.broadcast %cst_28 : f32 to vector<8x128xf32>
    %107 = arith.addf %106, %105 : vector<8x128xf32>
    %108 = arith.divf %106, %107 : vector<8x128xf32>
    %109 = vector.extract_strided_slice %87 {offsets = [0, 256], sizes = [8, 128], strides = [1, 1]} : vector<8x384xf32> to vector<8x128xf32>
    %110 = vector.extract_strided_slice %92 {offsets = [0, 256], sizes = [8, 128], strides = [1, 1]} : vector<8x384xf32> to vector<8x128xf32>
    %111 = arith.mulf %100, %110 : vector<8x128xf32>
    %112 = arith.addf %109, %111 : vector<8x128xf32>
    %113 = math.tanh %112 : vector<8x128xf32>
    %cst_29 = arith.constant 1.000000e+00 : f32
    %114 = vector.broadcast %cst_29 : f32 to vector<8x128xf32>
    %115 = arith.subf %114, %108 : vector<8x128xf32>
    %116 = arith.mulf %115, %113 : vector<8x128xf32>
    %117 = arith.mulf %108, %86 : vector<8x128xf32>
    %118 = arith.addf %116, %117 : vector<8x128xf32>
    %119 = arith.subf %118, %86 : vector<8x128xf32>
    %120 = vector.broadcast %88 : vector<8x1xf32> to vector<8x128xf32>
    %121 = arith.mulf %120, %119 : vector<8x128xf32>
    %122 = arith.addf %86, %121 : vector<8x128xf32>
    %123 = vector.extract_strided_slice %9 {offsets = [24, 0], sizes = [8, 384], strides = [1, 1]} : vector<64x384xf32> to vector<8x384xf32>
    %124 = vector.extract_strided_slice %11 {offsets = [24, 0], sizes = [8, 1], strides = [1, 1]} : vector<64x1xf32> to vector<8x1xf32>
    %125 = arith.truncf %122 : vector<8x128xf32> to vector<8x128xbf16>
    %cst_30 = arith.constant dense<0.000000e+00> : vector<8x384xf32>
    %126 = tpu.matmul %125, %12, %cst_30 {dimension_numbers = #tpu.dot_dimension_numbers<[1], [0], [0], [1], [0, 0, 1, 1], [], []>} : vector<8x128xbf16>, vector<128x384xbf16>, vector<8x384xf32> -> vector<8x384xf32>
    %127 = vector.broadcast %13 : vector<1x384xf32> to vector<8x384xf32>
    %128 = arith.addf %126, %127 : vector<8x384xf32>
    %129 = vector.extract_strided_slice %123 {offsets = [0, 0], sizes = [8, 128], strides = [1, 1]} : vector<8x384xf32> to vector<8x128xf32>
    %130 = vector.extract_strided_slice %128 {offsets = [0, 0], sizes = [8, 128], strides = [1, 1]} : vector<8x384xf32> to vector<8x128xf32>
    %131 = arith.addf %129, %130 : vector<8x128xf32>
    %132 = arith.negf %131 : vector<8x128xf32>
    %133 = math.exp %132 : vector<8x128xf32>
    %cst_31 = arith.constant 1.000000e+00 : f32
    %134 = vector.broadcast %cst_31 : f32 to vector<8x128xf32>
    %135 = arith.addf %134, %133 : vector<8x128xf32>
    %136 = arith.divf %134, %135 : vector<8x128xf32>
    %137 = vector.extract_strided_slice %123 {offsets = [0, 128], sizes = [8, 128], strides = [1, 1]} : vector<8x384xf32> to vector<8x128xf32>
    %138 = vector.extract_strided_slice %128 {offsets = [0, 128], sizes = [8, 128], strides = [1, 1]} : vector<8x384xf32> to vector<8x128xf32>
    %139 = arith.addf %137, %138 : vector<8x128xf32>
    %140 = arith.negf %139 : vector<8x128xf32>
    %141 = math.exp %140 : vector<8x128xf32>
    %cst_32 = arith.constant 1.000000e+00 : f32
    %142 = vector.broadcast %cst_32 : f32 to vector<8x128xf32>
    %143 = arith.addf %142, %141 : vector<8x128xf32>
    %144 = arith.divf %142, %143 : vector<8x128xf32>
    %145 = vector.extract_strided_slice %123 {offsets = [0, 256], sizes = [8, 128], strides = [1, 1]} : vector<8x384xf32> to vector<8x128xf32>
    %146 = vector.extract_strided_slice %128 {offsets = [0, 256], sizes = [8, 128], strides = [1, 1]} : vector<8x384xf32> to vector<8x128xf32>
    %147 = arith.mulf %136, %146 : vector<8x128xf32>
    %148 = arith.addf %145, %147 : vector<8x128xf32>
    %149 = math.tanh %148 : vector<8x128xf32>
    %cst_33 = arith.constant 1.000000e+00 : f32
    %150 = vector.broadcast %cst_33 : f32 to vector<8x128xf32>
    %151 = arith.subf %150, %144 : vector<8x128xf32>
    %152 = arith.mulf %151, %149 : vector<8x128xf32>
    %153 = arith.mulf %144, %122 : vector<8x128xf32>
    %154 = arith.addf %152, %153 : vector<8x128xf32>
    %155 = arith.subf %154, %122 : vector<8x128xf32>
    %156 = vector.broadcast %124 : vector<8x1xf32> to vector<8x128xf32>
    %157 = arith.mulf %156, %155 : vector<8x128xf32>
    %158 = arith.addf %122, %157 : vector<8x128xf32>
    %159 = vector.extract_strided_slice %9 {offsets = [32, 0], sizes = [8, 384], strides = [1, 1]} : vector<64x384xf32> to vector<8x384xf32>
    %160 = vector.extract_strided_slice %11 {offsets = [32, 0], sizes = [8, 1], strides = [1, 1]} : vector<64x1xf32> to vector<8x1xf32>
    %161 = arith.truncf %158 : vector<8x128xf32> to vector<8x128xbf16>
    %cst_34 = arith.constant dense<0.000000e+00> : vector<8x384xf32>
    %162 = tpu.matmul %161, %12, %cst_34 {dimension_numbers = #tpu.dot_dimension_numbers<[1], [0], [0], [1], [0, 0, 1, 1], [], []>} : vector<8x128xbf16>, vector<128x384xbf16>, vector<8x384xf32> -> vector<8x384xf32>
    %163 = vector.broadcast %13 : vector<1x384xf32> to vector<8x384xf32>
    %164 = arith.addf %162, %163 : vector<8x384xf32>
    %165 = vector.extract_strided_slice %159 {offsets = [0, 0], sizes = [8, 128], strides = [1, 1]} : vector<8x384xf32> to vector<8x128xf32>
    %166 = vector.extract_strided_slice %164 {offsets = [0, 0], sizes = [8, 128], strides = [1, 1]} : vector<8x384xf32> to vector<8x128xf32>
    %167 = arith.addf %165, %166 : vector<8x128xf32>
    %168 = arith.negf %167 : vector<8x128xf32>
    %169 = math.exp %168 : vector<8x128xf32>
    %cst_35 = arith.constant 1.000000e+00 : f32
    %170 = vector.broadcast %cst_35 : f32 to vector<8x128xf32>
    %171 = arith.addf %170, %169 : vector<8x128xf32>
    %172 = arith.divf %170, %171 : vector<8x128xf32>
    %173 = vector.extract_strided_slice %159 {offsets = [0, 128], sizes = [8, 128], strides = [1, 1]} : vector<8x384xf32> to vector<8x128xf32>
    %174 = vector.extract_strided_slice %164 {offsets = [0, 128], sizes = [8, 128], strides = [1, 1]} : vector<8x384xf32> to vector<8x128xf32>
    %175 = arith.addf %173, %174 : vector<8x128xf32>
    %176 = arith.negf %175 : vector<8x128xf32>
    %177 = math.exp %176 : vector<8x128xf32>
    %cst_36 = arith.constant 1.000000e+00 : f32
    %178 = vector.broadcast %cst_36 : f32 to vector<8x128xf32>
    %179 = arith.addf %178, %177 : vector<8x128xf32>
    %180 = arith.divf %178, %179 : vector<8x128xf32>
    %181 = vector.extract_strided_slice %159 {offsets = [0, 256], sizes = [8, 128], strides = [1, 1]} : vector<8x384xf32> to vector<8x128xf32>
    %182 = vector.extract_strided_slice %164 {offsets = [0, 256], sizes = [8, 128], strides = [1, 1]} : vector<8x384xf32> to vector<8x128xf32>
    %183 = arith.mulf %172, %182 : vector<8x128xf32>
    %184 = arith.addf %181, %183 : vector<8x128xf32>
    %185 = math.tanh %184 : vector<8x128xf32>
    %cst_37 = arith.constant 1.000000e+00 : f32
    %186 = vector.broadcast %cst_37 : f32 to vector<8x128xf32>
    %187 = arith.subf %186, %180 : vector<8x128xf32>
    %188 = arith.mulf %187, %185 : vector<8x128xf32>
    %189 = arith.mulf %180, %158 : vector<8x128xf32>
    %190 = arith.addf %188, %189 : vector<8x128xf32>
    %191 = arith.subf %190, %158 : vector<8x128xf32>
    %192 = vector.broadcast %160 : vector<8x1xf32> to vector<8x128xf32>
    %193 = arith.mulf %192, %191 : vector<8x128xf32>
    %194 = arith.addf %158, %193 : vector<8x128xf32>
    %195 = vector.extract_strided_slice %9 {offsets = [40, 0], sizes = [8, 384], strides = [1, 1]} : vector<64x384xf32> to vector<8x384xf32>
    %196 = vector.extract_strided_slice %11 {offsets = [40, 0], sizes = [8, 1], strides = [1, 1]} : vector<64x1xf32> to vector<8x1xf32>
    %197 = arith.truncf %194 : vector<8x128xf32> to vector<8x128xbf16>
    %cst_38 = arith.constant dense<0.000000e+00> : vector<8x384xf32>
    %198 = tpu.matmul %197, %12, %cst_38 {dimension_numbers = #tpu.dot_dimension_numbers<[1], [0], [0], [1], [0, 0, 1, 1], [], []>} : vector<8x128xbf16>, vector<128x384xbf16>, vector<8x384xf32> -> vector<8x384xf32>
    %199 = vector.broadcast %13 : vector<1x384xf32> to vector<8x384xf32>
    %200 = arith.addf %198, %199 : vector<8x384xf32>
    %201 = vector.extract_strided_slice %195 {offsets = [0, 0], sizes = [8, 128], strides = [1, 1]} : vector<8x384xf32> to vector<8x128xf32>
    %202 = vector.extract_strided_slice %200 {offsets = [0, 0], sizes = [8, 128], strides = [1, 1]} : vector<8x384xf32> to vector<8x128xf32>
    %203 = arith.addf %201, %202 : vector<8x128xf32>
    %204 = arith.negf %203 : vector<8x128xf32>
    %205 = math.exp %204 : vector<8x128xf32>
    %cst_39 = arith.constant 1.000000e+00 : f32
    %206 = vector.broadcast %cst_39 : f32 to vector<8x128xf32>
    %207 = arith.addf %206, %205 : vector<8x128xf32>
    %208 = arith.divf %206, %207 : vector<8x128xf32>
    %209 = vector.extract_strided_slice %195 {offsets = [0, 128], sizes = [8, 128], strides = [1, 1]} : vector<8x384xf32> to vector<8x128xf32>
    %210 = vector.extract_strided_slice %200 {offsets = [0, 128], sizes = [8, 128], strides = [1, 1]} : vector<8x384xf32> to vector<8x128xf32>
    %211 = arith.addf %209, %210 : vector<8x128xf32>
    %212 = arith.negf %211 : vector<8x128xf32>
    %213 = math.exp %212 : vector<8x128xf32>
    %cst_40 = arith.constant 1.000000e+00 : f32
    %214 = vector.broadcast %cst_40 : f32 to vector<8x128xf32>
    %215 = arith.addf %214, %213 : vector<8x128xf32>
    %216 = arith.divf %214, %215 : vector<8x128xf32>
    %217 = vector.extract_strided_slice %195 {offsets = [0, 256], sizes = [8, 128], strides = [1, 1]} : vector<8x384xf32> to vector<8x128xf32>
    %218 = vector.extract_strided_slice %200 {offsets = [0, 256], sizes = [8, 128], strides = [1, 1]} : vector<8x384xf32> to vector<8x128xf32>
    %219 = arith.mulf %208, %218 : vector<8x128xf32>
    %220 = arith.addf %217, %219 : vector<8x128xf32>
    %221 = math.tanh %220 : vector<8x128xf32>
    %cst_41 = arith.constant 1.000000e+00 : f32
    %222 = vector.broadcast %cst_41 : f32 to vector<8x128xf32>
    %223 = arith.subf %222, %216 : vector<8x128xf32>
    %224 = arith.mulf %223, %221 : vector<8x128xf32>
    %225 = arith.mulf %216, %194 : vector<8x128xf32>
    %226 = arith.addf %224, %225 : vector<8x128xf32>
    %227 = arith.subf %226, %194 : vector<8x128xf32>
    %228 = vector.broadcast %196 : vector<8x1xf32> to vector<8x128xf32>
    %229 = arith.mulf %228, %227 : vector<8x128xf32>
    %230 = arith.addf %194, %229 : vector<8x128xf32>
    %231 = vector.extract_strided_slice %9 {offsets = [48, 0], sizes = [8, 384], strides = [1, 1]} : vector<64x384xf32> to vector<8x384xf32>
    %232 = vector.extract_strided_slice %11 {offsets = [48, 0], sizes = [8, 1], strides = [1, 1]} : vector<64x1xf32> to vector<8x1xf32>
    %233 = arith.truncf %230 : vector<8x128xf32> to vector<8x128xbf16>
    %cst_42 = arith.constant dense<0.000000e+00> : vector<8x384xf32>
    %234 = tpu.matmul %233, %12, %cst_42 {dimension_numbers = #tpu.dot_dimension_numbers<[1], [0], [0], [1], [0, 0, 1, 1], [], []>} : vector<8x128xbf16>, vector<128x384xbf16>, vector<8x384xf32> -> vector<8x384xf32>
    %235 = vector.broadcast %13 : vector<1x384xf32> to vector<8x384xf32>
    %236 = arith.addf %234, %235 : vector<8x384xf32>
    %237 = vector.extract_strided_slice %231 {offsets = [0, 0], sizes = [8, 128], strides = [1, 1]} : vector<8x384xf32> to vector<8x128xf32>
    %238 = vector.extract_strided_slice %236 {offsets = [0, 0], sizes = [8, 128], strides = [1, 1]} : vector<8x384xf32> to vector<8x128xf32>
    %239 = arith.addf %237, %238 : vector<8x128xf32>
    %240 = arith.negf %239 : vector<8x128xf32>
    %241 = math.exp %240 : vector<8x128xf32>
    %cst_43 = arith.constant 1.000000e+00 : f32
    %242 = vector.broadcast %cst_43 : f32 to vector<8x128xf32>
    %243 = arith.addf %242, %241 : vector<8x128xf32>
    %244 = arith.divf %242, %243 : vector<8x128xf32>
    %245 = vector.extract_strided_slice %231 {offsets = [0, 128], sizes = [8, 128], strides = [1, 1]} : vector<8x384xf32> to vector<8x128xf32>
    %246 = vector.extract_strided_slice %236 {offsets = [0, 128], sizes = [8, 128], strides = [1, 1]} : vector<8x384xf32> to vector<8x128xf32>
    %247 = arith.addf %245, %246 : vector<8x128xf32>
    %248 = arith.negf %247 : vector<8x128xf32>
    %249 = math.exp %248 : vector<8x128xf32>
    %cst_44 = arith.constant 1.000000e+00 : f32
    %250 = vector.broadcast %cst_44 : f32 to vector<8x128xf32>
    %251 = arith.addf %250, %249 : vector<8x128xf32>
    %252 = arith.divf %250, %251 : vector<8x128xf32>
    %253 = vector.extract_strided_slice %231 {offsets = [0, 256], sizes = [8, 128], strides = [1, 1]} : vector<8x384xf32> to vector<8x128xf32>
    %254 = vector.extract_strided_slice %236 {offsets = [0, 256], sizes = [8, 128], strides = [1, 1]} : vector<8x384xf32> to vector<8x128xf32>
    %255 = arith.mulf %244, %254 : vector<8x128xf32>
    %256 = arith.addf %253, %255 : vector<8x128xf32>
    %257 = math.tanh %256 : vector<8x128xf32>
    %cst_45 = arith.constant 1.000000e+00 : f32
    %258 = vector.broadcast %cst_45 : f32 to vector<8x128xf32>
    %259 = arith.subf %258, %252 : vector<8x128xf32>
    %260 = arith.mulf %259, %257 : vector<8x128xf32>
    %261 = arith.mulf %252, %230 : vector<8x128xf32>
    %262 = arith.addf %260, %261 : vector<8x128xf32>
    %263 = arith.subf %262, %230 : vector<8x128xf32>
    %264 = vector.broadcast %232 : vector<8x1xf32> to vector<8x128xf32>
    %265 = arith.mulf %264, %263 : vector<8x128xf32>
    %266 = arith.addf %230, %265 : vector<8x128xf32>
    %267 = vector.extract_strided_slice %9 {offsets = [56, 0], sizes = [8, 384], strides = [1, 1]} : vector<64x384xf32> to vector<8x384xf32>
    %268 = vector.extract_strided_slice %11 {offsets = [56, 0], sizes = [8, 1], strides = [1, 1]} : vector<64x1xf32> to vector<8x1xf32>
    %269 = arith.truncf %266 : vector<8x128xf32> to vector<8x128xbf16>
    %cst_46 = arith.constant dense<0.000000e+00> : vector<8x384xf32>
    %270 = tpu.matmul %269, %12, %cst_46 {dimension_numbers = #tpu.dot_dimension_numbers<[1], [0], [0], [1], [0, 0, 1, 1], [], []>} : vector<8x128xbf16>, vector<128x384xbf16>, vector<8x384xf32> -> vector<8x384xf32>
    %271 = vector.broadcast %13 : vector<1x384xf32> to vector<8x384xf32>
    %272 = arith.addf %270, %271 : vector<8x384xf32>
    %273 = vector.extract_strided_slice %267 {offsets = [0, 0], sizes = [8, 128], strides = [1, 1]} : vector<8x384xf32> to vector<8x128xf32>
    %274 = vector.extract_strided_slice %272 {offsets = [0, 0], sizes = [8, 128], strides = [1, 1]} : vector<8x384xf32> to vector<8x128xf32>
    %275 = arith.addf %273, %274 : vector<8x128xf32>
    %276 = arith.negf %275 : vector<8x128xf32>
    %277 = math.exp %276 : vector<8x128xf32>
    %cst_47 = arith.constant 1.000000e+00 : f32
    %278 = vector.broadcast %cst_47 : f32 to vector<8x128xf32>
    %279 = arith.addf %278, %277 : vector<8x128xf32>
    %280 = arith.divf %278, %279 : vector<8x128xf32>
    %281 = vector.extract_strided_slice %267 {offsets = [0, 128], sizes = [8, 128], strides = [1, 1]} : vector<8x384xf32> to vector<8x128xf32>
    %282 = vector.extract_strided_slice %272 {offsets = [0, 128], sizes = [8, 128], strides = [1, 1]} : vector<8x384xf32> to vector<8x128xf32>
    %283 = arith.addf %281, %282 : vector<8x128xf32>
    %284 = arith.negf %283 : vector<8x128xf32>
    %285 = math.exp %284 : vector<8x128xf32>
    %cst_48 = arith.constant 1.000000e+00 : f32
    %286 = vector.broadcast %cst_48 : f32 to vector<8x128xf32>
    %287 = arith.addf %286, %285 : vector<8x128xf32>
    %288 = arith.divf %286, %287 : vector<8x128xf32>
    %289 = vector.extract_strided_slice %267 {offsets = [0, 256], sizes = [8, 128], strides = [1, 1]} : vector<8x384xf32> to vector<8x128xf32>
    %290 = vector.extract_strided_slice %272 {offsets = [0, 256], sizes = [8, 128], strides = [1, 1]} : vector<8x384xf32> to vector<8x128xf32>
    %291 = arith.mulf %280, %290 : vector<8x128xf32>
    %292 = arith.addf %289, %291 : vector<8x128xf32>
    %293 = math.tanh %292 : vector<8x128xf32>
    %cst_49 = arith.constant 1.000000e+00 : f32
    %294 = vector.broadcast %cst_49 : f32 to vector<8x128xf32>
    %295 = arith.subf %294, %288 : vector<8x128xf32>
    %296 = arith.mulf %295, %293 : vector<8x128xf32>
    %297 = arith.mulf %288, %266 : vector<8x128xf32>
    %298 = arith.addf %296, %297 : vector<8x128xf32>
    %299 = arith.subf %298, %266 : vector<8x128xf32>
    %300 = vector.broadcast %268 : vector<8x1xf32> to vector<8x128xf32>
    %301 = arith.mulf %300, %299 : vector<8x128xf32>
    %302 = arith.addf %266, %301 : vector<8x128xf32>
    %c0_50 = arith.constant 0 : index
    %c0_51 = arith.constant 0 : index
    %303 = vector.load %arg13[%c0_50, %c0_51] : memref<8x128xf32, #tpu.memory_space<vmem>>, vector<8x128xf32>
    tpu.vector_store %arg13[%c0_50, %c0_51], %302 {strides = array<i32>} : memref<8x128xf32, #tpu.memory_space<vmem>>, vector<8x128xf32>,
    %c0_i32_52 = arith.constant 0 : i32
    %304 = arith.cmpi eq, %arg1, %c0_i32_52 : i32
    %305 = arith.extui %304 : i1 to i32
    %c0_i32_53 = arith.constant 0 : i32
    %306 = arith.cmpi ne, %305, %c0_i32_53 : i32
    scf.if %306 {
      %c0_54 = arith.constant 0 : index
      %c0_55 = arith.constant 0 : index
      %307 = vector.load %arg8[%c0_54, %c0_55] : memref<128x128xf32, #tpu.memory_space<vmem>>, vector<128x128xf32>
      %cst_56 = arith.constant dense<0.000000e+00> : vector<8x128xf32>
      %308 = tpu.matmul %302, %307, %cst_56 {dimension_numbers = #tpu.dot_dimension_numbers<[1], [0], [0], [1], [0, 0, 1, 1], [], []>} : vector<8x128xf32>, vector<128x128xf32>, vector<8x128xf32> -> vector<8x128xf32>
      %c0_57 = arith.constant 0 : index
      %c0_58 = arith.constant 0 : index
      %309 = vector.load %arg9[%c0_57, %c0_58] : memref<1x128xf32, #tpu.memory_space<vmem>>, vector<1x128xf32>
      %310 = vector.broadcast %309 : vector<1x128xf32> to vector<8x128xf32>
      %311 = arith.addf %308, %310 : vector<8x128xf32>
      %cst_59 = arith.constant 0.000000e+00 : f32
      %312 = vector.broadcast %cst_59 : f32 to vector<8x128xf32>
      %313 = arith.maximumf %311, %312 : vector<8x128xf32>
      %c0_60 = arith.constant 0 : index
      %c0_61 = arith.constant 0 : index
      %314 = vector.load %arg10[%c0_60, %c0_61] : memref<128x128xf32, #tpu.memory_space<vmem>>, vector<128x128xf32>
      %cst_62 = arith.constant dense<0.000000e+00> : vector<8x128xf32>
      %315 = tpu.matmul %313, %314, %cst_62 {dimension_numbers = #tpu.dot_dimension_numbers<[1], [0], [0], [1], [0, 0, 1, 1], [], []>} : vector<8x128xf32>, vector<128x128xf32>, vector<8x128xf32> -> vector<8x128xf32>
      %c0_63 = arith.constant 0 : index
      %c0_64 = arith.constant 0 : index
      %316 = vector.load %arg11[%c0_63, %c0_64] : memref<1x128xf32, #tpu.memory_space<vmem>>, vector<1x128xf32>
      %317 = vector.broadcast %316 : vector<1x128xf32> to vector<8x128xf32>
      %318 = arith.addf %315, %317 : vector<8x128xf32>
      %319 = arith.negf %318 : vector<8x128xf32>
      %320 = math.exp %319 : vector<8x128xf32>
      %cst_65 = arith.constant 1.000000e+00 : f32
      %321 = vector.broadcast %cst_65 : f32 to vector<8x128xf32>
      %322 = arith.addf %321, %320 : vector<8x128xf32>
      %323 = arith.divf %321, %322 : vector<8x128xf32>
      %cst_66 = arith.constant 6.000000e+00 : f32
      %324 = vector.broadcast %cst_66 : f32 to vector<8x128xf32>
      %325 = arith.mulf %323, %324 : vector<8x128xf32>
      %c0_67 = arith.constant 0 : index
      %c0_68 = arith.constant 0 : index
      %326 = vector.load %arg12[%c0_67, %c0_68] : memref<8x128xf32, #tpu.memory_space<vmem>>, vector<8x128xf32>
      tpu.vector_store %arg12[%c0_67, %c0_68], %325 {strides = array<i32>} : memref<8x128xf32, #tpu.memory_space<vmem>>, vector<8x128xf32>,
    } else {
    }
    return
  }
  func.func @transform_0(%arg0: i32, %arg1: i32) -> (i32, i32, i32, i32) {
    %c0_i32 = arith.constant 0 : i32
    %c0_i32_0 = arith.constant 0 : i32
    %c0_i32_1 = arith.constant 0 : i32
    return %arg1, %arg0, %c0_i32, %c0_i32_0 : i32, i32, i32, i32
  }
  func.func @transform_1(%arg0: i32, %arg1: i32) -> (i32, i32, i32, i32) {
    %c0_i32 = arith.constant 0 : i32
    %c0_i32_0 = arith.constant 0 : i32
    %c0_i32_1 = arith.constant 0 : i32
    return %arg1, %arg0, %c0_i32, %c0_i32_0 : i32, i32, i32, i32
  }
  func.func @transform_2(%arg0: i32, %arg1: i32) -> (i32, i32) {
    %c0_i32 = arith.constant 0 : i32
    %c0_i32_0 = arith.constant 0 : i32
    %c0_i32_1 = arith.constant 0 : i32
    return %c0_i32, %c0_i32_0 : i32, i32
  }
  func.func @transform_3(%arg0: i32, %arg1: i32) -> (i32, i32) {
    %c0_i32 = arith.constant 0 : i32
    %c0_i32_0 = arith.constant 0 : i32
    %c0_i32_1 = arith.constant 0 : i32
    return %c0_i32, %c0_i32_0 : i32, i32
  }
  func.func @transform_4(%arg0: i32, %arg1: i32) -> (i32, i32) {
    %c0_i32 = arith.constant 0 : i32
    %c0_i32_0 = arith.constant 0 : i32
    %c0_i32_1 = arith.constant 0 : i32
    return %c0_i32, %c0_i32_0 : i32, i32
  }
  func.func @transform_5(%arg0: i32, %arg1: i32) -> (i32, i32) {
    %c0_i32 = arith.constant 0 : i32
    %c0_i32_0 = arith.constant 0 : i32
    %c0_i32_1 = arith.constant 0 : i32
    return %c0_i32, %c0_i32_0 : i32, i32
  }
  func.func @transform_6(%arg0: i32, %arg1: i32) -> (i32, i32) {
    %c0_i32 = arith.constant 0 : i32
    %c0_i32_0 = arith.constant 0 : i32
    %c0_i32_1 = arith.constant 0 : i32
    return %c0_i32, %c0_i32_0 : i32, i32
  }
  func.func @transform_7(%arg0: i32, %arg1: i32) -> (i32, i32) {
    %c0_i32 = arith.constant 0 : i32
    %c0_i32_0 = arith.constant 0 : i32
    %c0_i32_1 = arith.constant 0 : i32
    return %c0_i32, %c0_i32_0 : i32, i32
  }
  func.func @transform_8(%arg0: i32, %arg1: i32) -> (i32, i32) {
    %c0_i32 = arith.constant 0 : i32
    %c0_i32_0 = arith.constant 0 : i32
    %c0_i32_1 = arith.constant 0 : i32
    return %c0_i32, %c0_i32_0 : i32, i32
  }
  func.func @transform_9(%arg0: i32, %arg1: i32) -> (i32, i32) {
    %c0_i32 = arith.constant 0 : i32
    %c0_i32_0 = arith.constant 0 : i32
    %c0_i32_1 = arith.constant 0 : i32
    return %c0_i32, %c0_i32_0 : i32, i32
  }
  func.func @transform_10(%arg0: i32, %arg1: i32) -> (i32, i32) {
    %c0_i32 = arith.constant 0 : i32
    %c0_i32_0 = arith.constant 0 : i32
    return %arg0, %c0_i32 : i32, i32
  }
}

</mosaic_0001>

<llo_original>
// kernel: tpu_custom_call.1
$region0: #{tpu_custom_call.1}
  #allocation0 [shape = 'u32[]', space=smem, size = 0x4, offset = 0x4, fixed_abs, tag = 'smem constant byte address 0x4 - core index']
  #allocation1 [shape = 'u32[144,128]{1,0:T(1,128)}', space=vmem, size = 0x12000, scoped, tag = 'internal scratch']
  #allocation2 [shape = 'f32[8,128]{1,0:T(8,128)}', space=vmem, size = 0x1000, scoped, tag = 'scratch operand']
  %s0 = inlined_call_operand.vmem [shape: bf16[1,1,64,32], index: 0, kind: input, shape index: {}]
  %s1 = inlined_call_operand.vmem [shape: f32[1,1,64,1], index: 1, kind: input, shape index: {}]
  %s2 = inlined_call_operand.vmem [shape: bf16[32,384], index: 2, kind: input, shape index: {}]
  %s3 = inlined_call_operand.hbm [shape: bf16[128,384], index: 3, kind: input, shape index: {}]
  %s4 = inlined_call_operand.vmem [shape: f32[1,384], index: 4, kind: input, shape index: {}]
  %s5 = inlined_call_operand.vmem [shape: f32[1,384], index: 5, kind: input, shape index: {}]
  %s6 = inlined_call_operand.hbm [shape: f32[128,128], index: 6, kind: input, shape index: {}]
  %s7 = inlined_call_operand.vmem [shape: f32[1,128], index: 7, kind: input, shape index: {}]
  %s8 = inlined_call_operand.hbm [shape: f32[128,128], index: 8, kind: input, shape index: {}]
  %s9 = inlined_call_operand.vmem [shape: f32[1,128], index: 9, kind: input, shape index: {}]
  %s10 = inlined_call_operand.hbm [shape: f32[8,128], index: 10, kind: output, shape index: {}]
  %s11 = sld [smem:[#allocation0]]
  $region70: #{tpu_custom_call.1} parent=0
    _
  %s13 = ssub.s32 1, %s11
  %s14 = scalar_select 0, %s13, %s11
  $region1: #{tpu_custom_call.1} parent=0
    #allocation3 [shape = 'u8[98304]{0}', space=vmem, size = 0x18000, scoped, tag = 'input window, operand 3, single buffered']
    #allocation4 [shape = 's32[1]{0}', space=sflag, size = 0x4, scoped, tag = 'scoped memory for tpu_custom_call.1']
    #allocation5 [shape = 's32[1]{0}', space=sflag, size = 0x4, scoped, tag = 'scoped memory for tpu_custom_call.1']
    #allocation6 [shape = 'u8[65536]{0}', space=vmem, size = 0x10000, scoped, tag = 'input window, operand 6, single buffered']
    #allocation7 [shape = 's32[1]{0}', space=sflag, size = 0x4, scoped, tag = 'scoped memory for tpu_custom_call.1']
    #allocation8 [shape = 'u8[65536]{0}', space=vmem, size = 0x10000, scoped, tag = 'input window, operand 8, single buffered']
    #allocation9 [shape = 'u8[4096]{0}', space=vmem, size = 0x1000, scoped, tag = 'output window, operand 0, single buffered']
    %15 = vsyncpa [#allocation4], 0
    %16 = vsyncpa [#allocation7], 0
    %17 = vsyncpa [#allocation5], 0
    // Predicated region
    $region2: #{tpu_custom_call.1} parent=1 // pred_check
      _
    $region3: #{tpu_custom_call.1} parent=1 // pred_check_branch
      %19 = sbr.rel (0) target = $region5
    $region4: #{tpu_custom_call.1} parent=1 // pred_region
      _
    $region5: #{tpu_custom_call.1} parent=1 // pred_fallthru
      _
    // Predicated region
    $region6: #{tpu_custom_call.1} parent=1 // pred_check
      _
    $region7: #{tpu_custom_call.1} parent=1 // pred_check_branch
      %21 = sbr.rel (0) target = $region9
    $region8: #{tpu_custom_call.1} parent=1 // pred_region
      _
    $region9: #{tpu_custom_call.1} parent=1 // pred_fallthru
      _
    // Predicated region
    $region10: #{tpu_custom_call.1} parent=1 // pred_check
      _
    $region11: #{tpu_custom_call.1} parent=1 // pred_check_branch
      %23 = sbr.rel (0) target = $region13
    $region12: #{tpu_custom_call.1} parent=1 // pred_region
      _
    $region13: #{tpu_custom_call.1} parent=1 // pred_fallthru
      _
    // Predicated region
    $region14: #{tpu_custom_call.1} parent=1 // pred_check
      _
    $region15: #{tpu_custom_call.1} parent=1 // pred_check_branch
      %25 = sbr.rel (0) target = $region17
    $region16: #{tpu_custom_call.1} parent=1 // pred_region
      %s27 = ssub.s32 3072, 3072
      %28 = vsyncadd [#allocation4], %s27
      %s29 = sshll.u32 [#allocation3], 4
      %s30 = int_to_ptr.vmem [resolvable:$true] %s29
      %35 = dma.hbm_to_vmem [thread:$0]  %s3, 3072, %s30, [#allocation4], 192, 192, 12
    $region17: #{tpu_custom_call.1} parent=1 // pred_fallthru
      _
    // Predicated region
    $region18: #{tpu_custom_call.1} parent=1 // pred_check
      _
    $region19: #{tpu_custom_call.1} parent=1 // pred_check_branch
      %37 = sbr.rel (0) target = $region21
    $region20: #{tpu_custom_call.1} parent=1 // pred_region
      _
    $region21: #{tpu_custom_call.1} parent=1 // pred_fallthru
      _
    // Predicated region
    $region22: #{tpu_custom_call.1} parent=1 // pred_check
      _
    $region23: #{tpu_custom_call.1} parent=1 // pred_check_branch
      %39 = sbr.rel (0) target = $region25
    $region24: #{tpu_custom_call.1} parent=1 // pred_region
      _
    $region25: #{tpu_custom_call.1} parent=1 // pred_fallthru
      _
    // Predicated region
    $region26: #{tpu_custom_call.1} parent=1 // pred_check
      _
    $region27: #{tpu_custom_call.1} parent=1 // pred_check_branch
      %41 = sbr.rel (0) target = $region29
    $region28: #{tpu_custom_call.1} parent=1 // pred_region
      %s43 = ssub.s32 2048, 2048
      %44 = vsyncadd [#allocation7], %s43
      %s45 = sshll.u32 [#allocation6], 4
      %s46 = int_to_ptr.vmem [resolvable:$true] %s45
      %51 = dma.hbm_to_vmem [thread:$0]  %s6, 2048, %s46, [#allocation7], 128, 128, 8
    $region29: #{tpu_custom_call.1} parent=1 // pred_fallthru
      _
    // Predicated region
    $region30: #{tpu_custom_call.1} parent=1 // pred_check
      _
    $region31: #{tpu_custom_call.1} parent=1 // pred_check_branch
      %53 = sbr.rel (0) target = $region33
    $region32: #{tpu_custom_call.1} parent=1 // pred_region
      _
    $region33: #{tpu_custom_call.1} parent=1 // pred_fallthru
      _
    // Predicated region
    $region34: #{tpu_custom_call.1} parent=1 // pred_check
      _
    $region35: #{tpu_custom_call.1} parent=1 // pred_check_branch
      %55 = sbr.rel (0) target = $region37
    $region36: #{tpu_custom_call.1} parent=1 // pred_region
      %s57 = ssub.s32 2048, 2048
      %58 = vsyncadd [#allocation7], %s57
      %s59 = sshll.u32 [#allocation8], 4
      %s60 = int_to_ptr.vmem [resolvable:$true] %s59
      %65 = dma.hbm_to_vmem [thread:$0]  %s8, 2048, %s60, [#allocation7], 128, 128, 8
    $region37: #{tpu_custom_call.1} parent=1 // pred_fallthru
      _
    // Predicated region
    $region38: #{tpu_custom_call.1} parent=1 // pred_check
      _
    $region39: #{tpu_custom_call.1} parent=1 // pred_check_branch
      %67 = sbr.rel (0) target = $region41
    $region40: #{tpu_custom_call.1} parent=1 // pred_region
      _
    $region41: #{tpu_custom_call.1} parent=1 // pred_fallthru
      _
    // Predicated region
    $region42: #{tpu_custom_call.1} parent=1 // pred_check
      _
    $region43: #{tpu_custom_call.1} parent=1 // pred_check_branch
      %69 = sbr.rel (0) target = $region45
    $region44: #{tpu_custom_call.1} parent=1 // pred_region
      %70 = dma.done [#allocation4], 3072
    $region45: #{tpu_custom_call.1} parent=1 // pred_fallthru
      _
    // Predicated region
    $region46: #{tpu_custom_call.1} parent=1 // pred_check
      _
    $region47: #{tpu_custom_call.1} parent=1 // pred_check_branch
      %72 = sbr.rel (0) target = $region49
    $region48: #{tpu_custom_call.1} parent=1 // pred_region
      %73 = dma.done [#allocation7], 2048
    $region49: #{tpu_custom_call.1} parent=1 // pred_fallthru
      _
    // Predicated region
    $region50: #{tpu_custom_call.1} parent=1 // pred_check
      _
    $region51: #{tpu_custom_call.1} parent=1 // pred_check_branch
      %75 = sbr.rel (0) target = $region53
    $region52: #{tpu_custom_call.1} parent=1 // pred_region
      %76 = dma.done [#allocation7], 2048
    $region53: #{tpu_custom_call.1} parent=1 // pred_fallthru
      _
    %p78 = scmp.eq.s32.totalorder 0, 0
    // Predicated region
    $region54: #{tpu_custom_call.1} parent=1 // pred_check
      %p79 = pneg %p78
    $region55: #{tpu_custom_call.1} parent=1 // pred_check_branch
      %81 = sbr.rel (%p79) target = $region57
    $region56: #{tpu_custom_call.1} parent=1 // pred_region
      %82 = vst [vmem:[#allocation2] sm:$0xff] 0.0
    $region57: #{tpu_custom_call.1} parent=1 // pred_fallthru
      _
    %v83 = vld [vmem:[%s0] sm:$0xf]
    %v84 = vld [vmem:[%s0 + $0x4] sm:$0xf]
    %v85 = vld [vmem:[%s0 + $0x8] sm:$0xf]
    %v86 = vld [vmem:[%s0 + $0xc] sm:$0xf]
    %v87 = vld [vmem:[%s0 + $0x10] sm:$0xf]
    %v88 = vld [vmem:[%s0 + $0x14] sm:$0xf]
    %v89 = vld [vmem:[%s0 + $0x18] sm:$0xf]
    %v90 = vld [vmem:[%s0 + $0x1c] sm:$0xf]
    %v91 = vld [vmem:[%s2] sm:$0xff]
    %v92 = vld [vmem:[%s2 + $0x8] sm:$0xf]
    %v93 = vld [vmem:[%s2 + $0xc] sm:$0xff]
    %v94 = vld [vmem:[%s2 + $0x14] sm:$0xf]
    %v95 = vld [vmem:[%s2 + $0x18] sm:$0xff]
    %v96 = vld [vmem:[%s2 + $0x20] sm:$0xf]
    %v97 = vld [vmem:[%s2 + $0x24] sm:$0xff]
    %v98 = vld [vmem:[%s2 + $0x2c] sm:$0xf]
    %v99 = vld [vmem:[%s4] sm:$0x7]
    %v101 = vlaneseq
    %v102 = vshrl.u32 %v101, 7
    %v103 = vsub.s32 0, %v102
    %v104 = vrot.slane %v99, %v103
    %v105 = vlaneseq
    %v106 = vshrl.u32 %v105, 7
    %v107 = vsub.s32 1, %v106
    %v108 = vrot.slane %v99, %v107
    %v109 = vlaneseq
    %v110 = vshrl.u32 %v109, 7
    %v111 = vsub.s32 2, %v110
    %v112 = vrot.slane %v99, %v111
    %v124 = vunpack.c.l.b16 %v83
    %v125 = vunpack.c.l.b16 %v84
    %v126 = vunpack.c.l.b16 %v85
    %v127 = vunpack.c.l.b16 %v86
    %v128 = vunpack.c.l.b16 %v87
    %v129 = vunpack.c.l.b16 %v88
    %v130 = vunpack.c.l.b16 %v89
    %v131 = vunpack.c.l.b16 %v90
    %v132 = vpack.c.b16 %v125, %v124
    %v133 = vpack.c.b16 %v127, %v126
    %v134 = vpack.c.b16 %v129, %v128
    %v135 = vpack.c.b16 %v131, %v130
    %v144 = vunpack.c.l.b16 %v91
    %v145 = vunpack.c.h.b16 %v91
    %v146 = vunpack.c.l.b16 %v92
    %v147 = vunpack.c.l.b16 %v93
    %v148 = vunpack.c.h.b16 %v93
    %v149 = vunpack.c.l.b16 %v94
    %v150 = vunpack.c.l.b16 %v95
    %v151 = vunpack.c.h.b16 %v95
    %v152 = vunpack.c.l.b16 %v96
    %v153 = vunpack.c.l.b16 %v97
    %v154 = vunpack.c.h.b16 %v97
    %v155 = vunpack.c.l.b16 %v98
    %v156 = vpack.c.b16 %v147, %v144
    %v157 = vpack.c.b16 %v148, %v145
    %v158 = vpack.c.b16 %v149, %v146
    %v159 = vpack.c.b16 %v153, %v150
    %v160 = vpack.c.b16 %v154, %v151
    %v161 = vpack.c.b16 %v155, %v152
    %vm168 = vcmask 261120
    %v170 = vsel %vm168, %v132, 0
    %v173 = vsel %vm168, %v133, 0
    %v176 = vsel %vm168, %v134, 0
    %v179 = vsel %vm168, %v135, 0
    %181 = vmatprep.subr.bf16.mxu0 0
    %182 = vmatpush1.bf16.msra.mxu0 0
    %183 = vmatprep.subr.bf16.mxu0 0
    %184 = vmatpush1.bf16.msra.mxu0 0
    %185 = vmatprep.subr.bf16.mxu0 0
    %186 = vmatpush1.bf16.msra.mxu0 0
    %187 = vmatprep.subr.bf16.mxu0 0
    %188 = vmatpush1.bf16.msra.mxu0 0
    %189 = vmatprep.subr.bf16.mxu0 0
    %190 = vmatpush1.bf16.msra.mxu0 0
    %191 = vmatprep.subr.bf16.mxu0 0
    %192 = vmatpush1.bf16.msra.mxu0 0
    %193 = vmatprep.subr.bf16.mxu0 %v160
    %194 = vmatpush1.bf16.msra.mxu0 %v159
    %195 = vmatprep.subr.bf16.mxu0 %v157
    %196 = vmatpush1.bf16.msra.mxu0 %v156
    %197 = vmatprep.subr.bf16.mxu0 0
    %198 = vmatpush2.bf16.msra.mxu0 0
    %199 = vmatprep.subr.bf16.mxu0 0
    %200 = vmatpush2.bf16.msra.mxu0 0
    %201 = vmatprep.subr.bf16.mxu0 0
    %202 = vmatpush2.bf16.msra.mxu0 0
    %203 = vmatprep.subr.bf16.mxu0 0
    %204 = vmatpush2.bf16.msra.mxu0 0
    %205 = vmatprep.subr.bf16.mxu0 0
    %206 = vmatpush2.bf16.msra.mxu0 0
    %207 = vmatprep.subr.bf16.mxu0 0
    %208 = vmatpush2.bf16.msra.mxu0 0
    %209 = vmatprep.subr.bf16.mxu0 0
    %210 = vmatpush2.bf16.msra.mxu0 0
    %211 = vmatprep.subr.bf16.mxu0 0
    %212 = vmatpush2.bf16.msra.mxu0 0
    %213 = vmatprep.mubr.bf16.mxu0 0
    %214 = vmatmul.mubr.bf16.gmra.mxu0 %v170
    %v215 = vpop.f32.mrf.mxu0
    %v216 = vadd.f32 %v104, %v215
    %v217 = vpop.f32.mrf.mxu0
    %v218 = vadd.f32 %v108, %v217
    %v219 = vpop.f32.mrf.mxu0
    %v220 = vadd.f32 %v104, %v219
    %v221 = vpop.f32.mrf.mxu0
    %v222 = vadd.f32 %v108, %v221
    %223 = vmatprep.mubr.bf16.mxu0 0
    %224 = vmatmul.mubr.bf16.gmra.mxu0 %v173
    %v225 = vpop.f32.mrf.mxu0
    %v226 = vadd.f32 %v104, %v225
    %v227 = vpop.f32.mrf.mxu0
    %v228 = vadd.f32 %v108, %v227
    %v229 = vpop.f32.mrf.mxu0
    %v230 = vadd.f32 %v104, %v229
    %v231 = vpop.f32.mrf.mxu0
    %v232 = vadd.f32 %v108, %v231
    %233 = vmatprep.mubr.bf16.mxu0 0
    %234 = vmatmul.mubr.bf16.gmra.mxu0 %v176
    %v235 = vpop.f32.mrf.mxu0
    %v236 = vadd.f32 %v104, %v235
    %v237 = vpop.f32.mrf.mxu0
    %v238 = vadd.f32 %v108, %v237
    %v239 = vpop.f32.mrf.mxu0
    %v240 = vadd.f32 %v104, %v239
    %v241 = vpop.f32.mrf.mxu0
    %v242 = vadd.f32 %v108, %v241
    %243 = vmatprep.mubr.bf16.mxu0 0
    %244 = vmatmul.mubr.bf16.gmra.mxu0 %v179
    %v245 = vpop.f32.mrf.mxu0
    %v246 = vadd.f32 %v104, %v245
    %v247 = vpop.f32.mrf.mxu0
    %v248 = vadd.f32 %v108, %v247
    %v249 = vpop.f32.mrf.mxu0
    %v250 = vadd.f32 %v104, %v249
    %v251 = vpop.f32.mrf.mxu0
    %v252 = vadd.f32 %v108, %v251
    %253 = vdwg.mxu0
    %254 = vmatprep.subr.bf16.mxu0 0
    %255 = vmatpush1.bf16.msra.mxu0 0
    %256 = vmatprep.subr.bf16.mxu0 0
    %257 = vmatpush1.bf16.msra.mxu0 0
    %258 = vmatprep.subr.bf16.mxu0 0
    %259 = vmatpush1.bf16.msra.mxu0 0
    %260 = vmatprep.subr.bf16.mxu0 0
    %261 = vmatpush1.bf16.msra.mxu0 0
    %262 = vmatprep.subr.bf16.mxu0 0
    %263 = vmatpush1.bf16.msra.mxu0 0
    %264 = vmatprep.subr.bf16.mxu0 0
    %265 = vmatpush1.bf16.msra.mxu0 0
    %266 = vmatprep.subr.bf16.mxu0 0
    %267 = vmatpush1.bf16.msra.mxu0 %v161
    %268 = vmatprep.subr.bf16.mxu0 0
    %269 = vmatpush1.bf16.msra.mxu0 %v158
    %270 = vmatprep.subr.bf16.mxu0 0
    %271 = vmatpush2.bf16.msra.mxu0 0
    %272 = vmatprep.subr.bf16.mxu0 0
    %273 = vmatpush2.bf16.msra.mxu0 0
    %274 = vmatprep.subr.bf16.mxu0 0
    %275 = vmatpush2.bf16.msra.mxu0 0
    %276 = vmatprep.subr.bf16.mxu0 0
    %277 = vmatpush2.bf16.msra.mxu0 0
    %278 = vmatprep.subr.bf16.mxu0 0
    %279 = vmatpush2.bf16.msra.mxu0 0
    %280 = vmatprep.subr.bf16.mxu0 0
    %281 = vmatpush2.bf16.msra.mxu0 0
    %282 = vmatprep.subr.bf16.mxu0 0
    %283 = vmatpush2.bf16.msra.mxu0 0
    %284 = vmatprep.subr.bf16.mxu0 0
    %285 = vmatpush2.bf16.msra.mxu0 0
    %286 = vmatprep.mubr.bf16.mxu0 0
    %287 = vmatmul.mubr.bf16.gmra.mxu0 %v170
    %v288 = vpop.f32.mrf.mxu0
    %v289 = vadd.f32 %v112, %v288
    %v290 = vpop.f32.mrf.mxu0
    %v291 = vpop.f32.mrf.mxu0
    %v292 = vadd.f32 %v112, %v291
    %v293 = vpop.f32.mrf.mxu0
    %294 = vmatprep.mubr.bf16.mxu0 0
    %295 = vmatmul.mubr.bf16.gmra.mxu0 %v173
    %v296 = vpop.f32.mrf.mxu0
    %v297 = vadd.f32 %v112, %v296
    %v298 = vpop.f32.mrf.mxu0
    %v299 = vpop.f32.mrf.mxu0
    %v300 = vadd.f32 %v112, %v299
    %v301 = vpop.f32.mrf.mxu0
    %302 = vmatprep.mubr.bf16.mxu0 0
    %303 = vmatmul.mubr.bf16.gmra.mxu0 %v176
    %v304 = vpop.f32.mrf.mxu0
    %v305 = vadd.f32 %v112, %v304
    %v306 = vpop.f32.mrf.mxu0
    %v307 = vpop.f32.mrf.mxu0
    %v308 = vadd.f32 %v112, %v307
    %v309 = vpop.f32.mrf.mxu0
    %310 = vmatprep.mubr.bf16.mxu0 0
    %311 = vmatmul.mubr.bf16.gmra.mxu0 %v179
    %v312 = vpop.f32.mrf.mxu0
    %v313 = vadd.f32 %v112, %v312
    %v314 = vpop.f32.mrf.mxu0
    %v315 = vpop.f32.mrf.mxu0
    %v316 = vadd.f32 %v112, %v315
    %v317 = vpop.f32.mrf.mxu0
    %318 = vdwg.mxu0
    %v319 = vld [vmem:[%s1] sm:$0xff]
    %v320 = vld [vmem:[%s1 + $0x8] sm:$0xff]
    %v321 = vld [vmem:[%s1 + $0x10] sm:$0xff]
    %v322 = vld [vmem:[%s1 + $0x18] sm:$0xff]
    %v323 = vld [vmem:[%s1 + $0x20] sm:$0xff]
    %v324 = vld [vmem:[%s1 + $0x28] sm:$0xff]
    %v325 = vld [vmem:[%s1 + $0x30] sm:$0xff]
    %v326 = vld [vmem:[%s1 + $0x38] sm:$0xff]
    %v327 = vld [vmem:[#allocation3] sm:$0xff]
    %v328 = vld [vmem:[#allocation3 + $0x8] sm:$0xf]
    %v329 = vld [vmem:[#allocation3 + $0xc] sm:$0xff]
    %v330 = vld [vmem:[#allocation3 + $0x14] sm:$0xf]
    %v331 = vld [vmem:[#allocation3 + $0x18] sm:$0xff]
    %v332 = vld [vmem:[#allocation3 + $0x20] sm:$0xf]
    %v333 = vld [vmem:[#allocation3 + $0x24] sm:$0xff]
    %v334 = vld [vmem:[#allocation3 + $0x2c] sm:$0xf]
    %v335 = vld [vmem:[#allocation3 + $0x30] sm:$0xff]
    %v336 = vld [vmem:[#allocation3 + $0x38] sm:$0xf]
    %v337 = vld [vmem:[#allocation3 + $0x3c] sm:$0xff]
    %v338 = vld [vmem:[#allocation3 + $0x44] sm:$0xf]
    %v339 = vld [vmem:[#allocation3 + $0x48] sm:$0xff]
    %v340 = vld [vmem:[#allocation3 + $0x50] sm:$0xf]
    %v341 = vld [vmem:[#allocation3 + $0x54] sm:$0xff]
    %v342 = vld [vmem:[#allocation3 + $0x5c] sm:$0xf]
    %v343 = vld [vmem:[#allocation3 + $0x60] sm:$0xff]
    %v344 = vld [vmem:[#allocation3 + $0x68] sm:$0xf]
    %v345 = vld [vmem:[#allocation3 + $0x6c] sm:$0xff]
    %v346 = vld [vmem:[#allocation3 + $0x74] sm:$0xf]
    %v347 = vld [vmem:[#allocation3 + $0x78] sm:$0xff]
    %v348 = vld [vmem:[#allocation3 + $0x80] sm:$0xf]
    %v349 = vld [vmem:[#allocation3 + $0x84] sm:$0xff]
    %v350 = vld [vmem:[#allocation3 + $0x8c] sm:$0xf]
    %v351 = vld [vmem:[#allocation3 + $0x90] sm:$0xff]
    %v352 = vld [vmem:[#allocation3 + $0x98] sm:$0xf]
    %v353 = vld [vmem:[#allocation3 + $0x9c] sm:$0xff]
    %v354 = vld [vmem:[#allocation3 + $0xa4] sm:$0xf]
    %v355 = vld [vmem:[#allocation3 + $0xa8] sm:$0xff]
    %v356 = vld [vmem:[#allocation3 + $0xb0] sm:$0xf]
    %v357 = vld [vmem:[#allocation3 + $0xb4] sm:$0xff]
    %v358 = vld [vmem:[#allocation3 + $0xbc] sm:$0xf]
    %v359 = vld [vmem:[%s5] sm:$0x7]
    %v360 = vld [vmem:[#allocation2] sm:$0xff]
    %v361 = vpack.c.bf16 %v360, %v360
    %v363 = vlaneseq
    %v364 = vshrl.u32 %v363, 7
    %v365 = vsub.s32 0, %v364
    %v366 = vrot.slane %v359, %v365
    %v367 = vlaneseq
    %v368 = vshrl.u32 %v367, 7
    %v369 = vsub.s32 1, %v368
    %v370 = vrot.slane %v359, %v369
    %v371 = vlaneseq
    %v372 = vshrl.u32 %v371, 7
    %v373 = vsub.s32 2, %v372
    %v374 = vrot.slane %v359, %v373
    %v410 = vunpack.c.l.b16 %v327
    %v411 = vunpack.c.h.b16 %v327
    %v412 = vunpack.c.l.b16 %v328
    %v413 = vunpack.c.l.b16 %v329
    %v414 = vunpack.c.h.b16 %v329
    %v415 = vunpack.c.l.b16 %v330
    %v416 = vunpack.c.l.b16 %v331
    %v417 = vunpack.c.h.b16 %v331
    %v418 = vunpack.c.l.b16 %v332
    %v419 = vunpack.c.l.b16 %v333
    %v420 = vunpack.c.h.b16 %v333
    %v421 = vunpack.c.l.b16 %v334
    %v422 = vunpack.c.l.b16 %v335
    %v423 = vunpack.c.h.b16 %v335
    %v424 = vunpack.c.l.b16 %v336
    %v425 = vunpack.c.l.b16 %v337
    %v426 = vunpack.c.h.b16 %v337
    %v427 = vunpack.c.l.b16 %v338
    %v428 = vunpack.c.l.b16 %v339
    %v429 = vunpack.c.h.b16 %v339
    %v430 = vunpack.c.l.b16 %v340
    %v431 = vunpack.c.l.b16 %v341
    %v432 = vunpack.c.h.b16 %v341
    %v433 = vunpack.c.l.b16 %v342
    %v434 = vunpack.c.l.b16 %v343
    %v435 = vunpack.c.h.b16 %v343
    %v436 = vunpack.c.l.b16 %v344
    %v437 = vunpack.c.l.b16 %v345
    %v438 = vunpack.c.h.b16 %v345
    %v439 = vunpack.c.l.b16 %v346
    %v440 = vunpack.c.l.b16 %v347
    %v441 = vunpack.c.h.b16 %v347
    %v442 = vunpack.c.l.b16 %v348
    %v443 = vunpack.c.l.b16 %v349
    %v444 = vunpack.c.h.b16 %v349
    %v445 = vunpack.c.l.b16 %v350
    %v446 = vunpack.c.l.b16 %v351
    %v447 = vunpack.c.h.b16 %v351
    %v448 = vunpack.c.l.b16 %v352
    %v449 = vunpack.c.l.b16 %v353
    %v450 = vunpack.c.h.b16 %v353
    %v451 = vunpack.c.l.b16 %v354
    %v452 = vunpack.c.l.b16 %v355
    %v453 = vunpack.c.h.b16 %v355
    %v454 = vunpack.c.l.b16 %v356
    %v455 = vunpack.c.l.b16 %v357
    %v456 = vunpack.c.h.b16 %v357
    %v457 = vunpack.c.l.b16 %v358
    %v458 = vpack.c.b16 %v413, %v410
    %v459 = vpack.c.b16 %v414, %v411
    %v460 = vpack.c.b16 %v415, %v412
    %v461 = vpack.c.b16 %v419, %v416
    %v462 = vpack.c.b16 %v420, %v417
    %v463 = vpack.c.b16 %v421, %v418
    %v464 = vpack.c.b16 %v425, %v422
    %v465 = vpack.c.b16 %v426, %v423
    %v466 = vpack.c.b16 %v427, %v424
    %v467 = vpack.c.b16 %v431, %v428
    %v468 = vpack.c.b16 %v432, %v429
    %v469 = vpack.c.b16 %v433, %v430
    %v470 = vpack.c.b16 %v437, %v434
    %v471 = vpack.c.b16 %v438, %v435
    %v472 = vpack.c.b16 %v439, %v436
    %v473 = vpack.c.b16 %v443, %v440
    %v474 = vpack.c.b16 %v444, %v441
    %v475 = vpack.c.b16 %v445, %v442
    %v476 = vpack.c.b16 %v449, %v446
    %v477 = vpack.c.b16 %v450, %v447
    %v478 = vpack.c.b16 %v451, %v448
    %v479 = vpack.c.b16 %v455, %v452
    %v480 = vpack.c.b16 %v456, %v453
    %v481 = vpack.c.b16 %v457, %v454
    %506 = vmatprep.subr.bf16.mxu0 %v480
    %507 = vmatpush1.bf16.msra.mxu0 %v479
    %508 = vmatprep.subr.bf16.mxu0 %v477
    %509 = vmatpush1.bf16.msra.mxu0 %v476
    %510 = vmatprep.subr.bf16.mxu0 %v474
    %511 = vmatpush1.bf16.msra.mxu0 %v473
    %512 = vmatprep.subr.bf16.mxu0 %v471
    %513 = vmatpush1.bf16.msra.mxu0 %v470
    %514 = vmatprep.subr.bf16.mxu0 %v468
    %515 = vmatpush1.bf16.msra.mxu0 %v467
    %516 = vmatprep.subr.bf16.mxu0 %v465
    %517 = vmatpush1.bf16.msra.mxu0 %v464
    %518 = vmatprep.subr.bf16.mxu0 %v462
    %519 = vmatpush1.bf16.msra.mxu0 %v461
    %520 = vmatprep.subr.bf16.mxu0 %v459
    %521 = vmatpush1.bf16.msra.mxu0 %v458
    %522 = vmatprep.subr.bf16.mxu0 0
    %523 = vmatpush2.bf16.msra.mxu0 0
    %524 = vmatprep.subr.bf16.mxu0 0
    %525 = vmatpush2.bf16.msra.mxu0 0
    %526 = vmatprep.subr.bf16.mxu0 0
    %527 = vmatpush2.bf16.msra.mxu0 0
    %528 = vmatprep.subr.bf16.mxu0 0
    %529 = vmatpush2.bf16.msra.mxu0 0
    %530 = vmatprep.subr.bf16.mxu0 0
    %531 = vmatpush2.bf16.msra.mxu0 0
    %532 = vmatprep.subr.bf16.mxu0 0
    %533 = vmatpush2.bf16.msra.mxu0 0
    %534 = vmatprep.subr.bf16.mxu0 0
    %535 = vmatpush2.bf16.msra.mxu0 0
    %536 = vmatprep.subr.bf16.mxu0 0
    %537 = vmatpush2.bf16.msra.mxu0 0
    %538 = vmatprep.mubr.bf16.mxu0 0
    %539 = vmatmul.mubr.bf16.gmra.mxu0 %v361
    %v540 = vpop.f32.mrf.mxu0
    %v541 = vadd.f32 %v366, %v540
    %v542 = vpop.f32.mrf.mxu0
    %v543 = vadd.f32 %v370, %v542
    %v544 = vpop.f32.mrf.mxu0
    %v545 = vpop.f32.mrf.mxu0
    %546 = vdwg.mxu0
    %547 = vmatprep.subr.bf16.mxu0 0
    %548 = vmatpush1.bf16.msra.mxu0 %v481
    %549 = vmatprep.subr.bf16.mxu0 0
    %550 = vmatpush1.bf16.msra.mxu0 %v478
    %551 = vmatprep.subr.bf16.mxu0 0
    %552 = vmatpush1.bf16.msra.mxu0 %v475
    %553 = vmatprep.subr.bf16.mxu0 0
    %554 = vmatpush1.bf16.msra.mxu0 %v472
    %555 = vmatprep.subr.bf16.mxu0 0
    %556 = vmatpush1.bf16.msra.mxu0 %v469
    %557 = vmatprep.subr.bf16.mxu0 0
    %558 = vmatpush1.bf16.msra.mxu0 %v466
    %559 = vmatprep.subr.bf16.mxu0 0
    %560 = vmatpush1.bf16.msra.mxu0 %v463
    %561 = vmatprep.subr.bf16.mxu0 0
    %562 = vmatpush1.bf16.msra.mxu0 %v460
    %563 = vmatprep.subr.bf16.mxu0 0
    %564 = vmatpush2.bf16.msra.mxu0 0
    %565 = vmatprep.subr.bf16.mxu0 0
    %566 = vmatpush2.bf16.msra.mxu0 0
    %567 = vmatprep.subr.bf16.mxu0 0
    %568 = vmatpush2.bf16.msra.mxu0 0
    %569 = vmatprep.subr.bf16.mxu0 0
    %570 = vmatpush2.bf16.msra.mxu0 0
    %571 = vmatprep.subr.bf16.mxu0 0
    %572 = vmatpush2.bf16.msra.mxu0 0
    %573 = vmatprep.subr.bf16.mxu0 0
    %574 = vmatpush2.bf16.msra.mxu0 0
    %575 = vmatprep.subr.bf16.mxu0 0
    %576 = vmatpush2.bf16.msra.mxu0 0
    %577 = vmatprep.subr.bf16.mxu0 0
    %578 = vmatpush2.bf16.msra.mxu0 0
    %579 = vmatprep.mubr.bf16.mxu0 0
    %580 = vmatmul.mubr.bf16.gmra.mxu0 %v361
    %v581 = vpop.f32.mrf.mxu0
    %v582 = vadd.f32 %v374, %v581
    %v583 = vpop.f32.mrf.mxu0
    %v584 = vpop.f32.mrf.mxu0
    %v585 = vpop.f32.mrf.mxu0
    %586 = vdwg.mxu0
    %v587 = vadd.f32 %v216, %v541
    %v588 = vxor.u32 %v587, 2147483648
    %v589 = vmul.f32 %v588, 1.442695
    %v590 = vpow.pop %v589
    %v591 = vadd.f32 %v590, 1.0
    %v592 = vrcp.pop %v591
    %v593 = vmul.f32 1.0, %v592
    %v594 = vadd.f32 %v218, %v543
    %v595 = vxor.u32 %v594, 2147483648
    %v596 = vmul.f32 %v595, 1.442695
    %v597 = vpow.pop %v596
    %v598 = vadd.f32 %v597, 1.0
    %v599 = vrcp.pop %v598
    %v600 = vmul.f32 1.0, %v599
    %v601 = vmul.f32 %v593, %v582
    %v602 = vadd.f32 %v289, %v601
    %v603 = vtanh.pop %v602
    %v604 = vsub.f32 1.0, %v600
    %v605 = vmul.f32 %v604, %v603
    %v606 = vmul.f32 %v600, %v360
    %v607 = vadd.f32 %v605, %v606
    %v608 = vsub.f32 %v607, %v360
    %610 = vset.pattern.permute.xlu0 0
    %611 = vperm.xlu0 %610, %v319
    %v612 = vpop.permute.xlu0 %611
    %v614 = vmul.f32 %v612, %v608
    %v615 = vadd.f32 %v360, %v614
    %v616 = vpack.c.bf16 %v615, %v615
    %617 = vmatprep.subr.bf16.mxu0 %v480
    %618 = vmatpush1.bf16.msra.mxu0 %v479
    %619 = vmatprep.subr.bf16.mxu0 %v477
    %620 = vmatpush1.bf16.msra.mxu0 %v476
    %621 = vmatprep.subr.bf16.mxu0 %v474
    %622 = vmatpush1.bf16.msra.mxu0 %v473
    %623 = vmatprep.subr.bf16.mxu0 %v471
    %624 = vmatpush1.bf16.msra.mxu0 %v470
    %625 = vmatprep.subr.bf16.mxu0 %v468
    %626 = vmatpush1.bf16.msra.mxu0 %v467
    %627 = vmatprep.subr.bf16.mxu0 %v465
    %628 = vmatpush1.bf16.msra.mxu0 %v464
    %629 = vmatprep.subr.bf16.mxu0 %v462
    %630 = vmatpush1.bf16.msra.mxu0 %v461
    %631 = vmatprep.subr.bf16.mxu0 %v459
    %632 = vmatpush1.bf16.msra.mxu0 %v458
    %633 = vmatprep.subr.bf16.mxu0 0
    %634 = vmatpush2.bf16.msra.mxu0 0
    %635 = vmatprep.subr.bf16.mxu0 0
    %636 = vmatpush2.bf16.msra.mxu0 0
    %637 = vmatprep.subr.bf16.mxu0 0
    %638 = vmatpush2.bf16.msra.mxu0 0
    %639 = vmatprep.subr.bf16.mxu0 0
    %640 = vmatpush2.bf16.msra.mxu0 0
    %641 = vmatprep.subr.bf16.mxu0 0
    %642 = vmatpush2.bf16.msra.mxu0 0
    %643 = vmatprep.subr.bf16.mxu0 0
    %644 = vmatpush2.bf16.msra.mxu0 0
    %645 = vmatprep.subr.bf16.mxu0 0
    %646 = vmatpush2.bf16.msra.mxu0 0
    %647 = vmatprep.subr.bf16.mxu0 0
    %648 = vmatpush2.bf16.msra.mxu0 0
    %649 = vmatprep.mubr.bf16.mxu0 0
    %650 = vmatmul.mubr.bf16.gmra.mxu0 %v616
    %v651 = vpop.f32.mrf.mxu0
    %v652 = vadd.f32 %v366, %v651
    %v653 = vpop.f32.mrf.mxu0
    %v654 = vadd.f32 %v370, %v653
    %v655 = vpop.f32.mrf.mxu0
    %v656 = vpop.f32.mrf.mxu0
    %657 = vdwg.mxu0
    %658 = vmatprep.subr.bf16.mxu0 0
    %659 = vmatpush1.bf16.msra.mxu0 %v481
    %660 = vmatprep.subr.bf16.mxu0 0
    %661 = vmatpush1.bf16.msra.mxu0 %v478
    %662 = vmatprep.subr.bf16.mxu0 0
    %663 = vmatpush1.bf16.msra.mxu0 %v475
    %664 = vmatprep.subr.bf16.mxu0 0
    %665 = vmatpush1.bf16.msra.mxu0 %v472
    %666 = vmatprep.subr.bf16.mxu0 0
    %667 = vmatpush1.bf16.msra.mxu0 %v469
    %668 = vmatprep.subr.bf16.mxu0 0
    %669 = vmatpush1.bf16.msra.mxu0 %v466
    %670 = vmatprep.subr.bf16.mxu0 0
    %671 = vmatpush1.bf16.msra.mxu0 %v463
    %672 = vmatprep.subr.bf16.mxu0 0
    %673 = vmatpush1.bf16.msra.mxu0 %v460
    %674 = vmatprep.subr.bf16.mxu0 0
    %675 = vmatpush2.bf16.msra.mxu0 0
    %676 = vmatprep.subr.bf16.mxu0 0
    %677 = vmatpush2.bf16.msra.mxu0 0
    %678 = vmatprep.subr.bf16.mxu0 0
    %679 = vmatpush2.bf16.msra.mxu0 0
    %680 = vmatprep.subr.bf16.mxu0 0
    %681 = vmatpush2.bf16.msra.mxu0 0
    %682 = vmatprep.subr.bf16.mxu0 0
    %683 = vmatpush2.bf16.msra.mxu0 0
    %684 = vmatprep.subr.bf16.mxu0 0
    %685 = vmatpush2.bf16.msra.mxu0 0
    %686 = vmatprep.subr.bf16.mxu0 0
    %687 = vmatpush2.bf16.msra.mxu0 0
    %688 = vmatprep.subr.bf16.mxu0 0
    %689 = vmatpush2.bf16.msra.mxu0 0
    %690 = vmatprep.mubr.bf16.mxu0 0
    %691 = vmatmul.mubr.bf16.gmra.mxu0 %v616
    %v692 = vpop.f32.mrf.mxu0
    %v693 = vadd.f32 %v374, %v692
    %v694 = vpop.f32.mrf.mxu0
    %v695 = vpop.f32.mrf.mxu0
    %v696 = vpop.f32.mrf.mxu0
    %697 = vdwg.mxu0
    %v698 = vadd.f32 %v220, %v652
    %v699 = vxor.u32 %v698, 2147483648
    %v700 = vmul.f32 %v699, 1.442695
    %v701 = vpow.pop %v700
    %v702 = vadd.f32 %v701, 1.0
    %v703 = vrcp.pop %v702
    %v704 = vmul.f32 1.0, %v703
    %v705 = vadd.f32 %v222, %v654
    %v706 = vxor.u32 %v705, 2147483648
    %v707 = vmul.f32 %v706, 1.442695
    %v708 = vpow.pop %v707
    %v709 = vadd.f32 %v708, 1.0
    %v710 = vrcp.pop %v709
    %v711 = vmul.f32 1.0, %v710
    %v712 = vmul.f32 %v704, %v693
    %v713 = vadd.f32 %v292, %v712
    %v714 = vtanh.pop %v713
    %v715 = vsub.f32 1.0, %v711
    %v716 = vmul.f32 %v715, %v714
    %v717 = vmul.f32 %v711, %v615
    %v718 = vadd.f32 %v716, %v717
    %v719 = vsub.f32 %v718, %v615
    %721 = vset.pattern.permute.xlu0 0
    %722 = vperm.xlu0 %721, %v320
    %v723 = vpop.permute.xlu0 %722
    %v725 = vmul.f32 %v723, %v719
    %v726 = vadd.f32 %v615, %v725
    %v727 = vpack.c.bf16 %v726, %v726
    %728 = vmatprep.subr.bf16.mxu0 %v480
    %729 = vmatpush1.bf16.msra.mxu0 %v479
    %730 = vmatprep.subr.bf16.mxu0 %v477
    %731 = vmatpush1.bf16.msra.mxu0 %v476
    %732 = vmatprep.subr.bf16.mxu0 %v474
    %733 = vmatpush1.bf16.msra.mxu0 %v473
    %734 = vmatprep.subr.bf16.mxu0 %v471
    %735 = vmatpush1.bf16.msra.mxu0 %v470
    %736 = vmatprep.subr.bf16.mxu0 %v468
    %737 = vmatpush1.bf16.msra.mxu0 %v467
    %738 = vmatprep.subr.bf16.mxu0 %v465
    %739 = vmatpush1.bf16.msra.mxu0 %v464
    %740 = vmatprep.subr.bf16.mxu0 %v462
    %741 = vmatpush1.bf16.msra.mxu0 %v461
    %742 = vmatprep.subr.bf16.mxu0 %v459
    %743 = vmatpush1.bf16.msra.mxu0 %v458
    %744 = vmatprep.subr.bf16.mxu0 0
    %745 = vmatpush2.bf16.msra.mxu0 0
    %746 = vmatprep.subr.bf16.mxu0 0
    %747 = vmatpush2.bf16.msra.mxu0 0
    %748 = vmatprep.subr.bf16.mxu0 0
    %749 = vmatpush2.bf16.msra.mxu0 0
    %750 = vmatprep.subr.bf16.mxu0 0
    %751 = vmatpush2.bf16.msra.mxu0 0
    %752 = vmatprep.subr.bf16.mxu0 0
    %753 = vmatpush2.bf16.msra.mxu0 0
    %754 = vmatprep.subr.bf16.mxu0 0
    %755 = vmatpush2.bf16.msra.mxu0 0
    %756 = vmatprep.subr.bf16.mxu0 0
    %757 = vmatpush2.bf16.msra.mxu0 0
    %758 = vmatprep.subr.bf16.mxu0 0
    %759 = vmatpush2.bf16.msra.mxu0 0
    %760 = vmatprep.mubr.bf16.mxu0 0
    %761 = vmatmul.mubr.bf16.gmra.mxu0 %v727
    %v762 = vpop.f32.mrf.mxu0
    %v763 = vadd.f32 %v366, %v762
    %v764 = vpop.f32.mrf.mxu0
    %v765 = vadd.f32 %v370, %v764
    %v766 = vpop.f32.mrf.mxu0
    %v767 = vpop.f32.mrf.mxu0
    %768 = vdwg.mxu0
    %769 = vmatprep.subr.bf16.mxu0 0
    %770 = vmatpush1.bf16.msra.mxu0 %v481
    %771 = vmatprep.subr.bf16.mxu0 0
    %772 = vmatpush1.bf16.msra.mxu0 %v478
    %773 = vmatprep.subr.bf16.mxu0 0
    %774 = vmatpush1.bf16.msra.mxu0 %v475
    %775 = vmatprep.subr.bf16.mxu0 0
    %776 = vmatpush1.bf16.msra.mxu0 %v472
    %777 = vmatprep.subr.bf16.mxu0 0
    %778 = vmatpush1.bf16.msra.mxu0 %v469
    %779 = vmatprep.subr.bf16.mxu0 0
    %780 = vmatpush1.bf16.msra.mxu0 %v466
    %781 = vmatprep.subr.bf16.mxu0 0
    %782 = vmatpush1.bf16.msra.mxu0 %v463
    %783 = vmatprep.subr.bf16.mxu0 0
    %784 = vmatpush1.bf16.msra.mxu0 %v460
    %785 = vmatprep.subr.bf16.mxu0 0
    %786 = vmatpush2.bf16.msra.mxu0 0
    %787 = vmatprep.subr.bf16.mxu0 0
    %788 = vmatpush2.bf16.msra.mxu0 0
    %789 = vmatprep.subr.bf16.mxu0 0
    %790 = vmatpush2.bf16.msra.mxu0 0
    %791 = vmatprep.subr.bf16.mxu0 0
    %792 = vmatpush2.bf16.msra.mxu0 0
    %793 = vmatprep.subr.bf16.mxu0 0
    %794 = vmatpush2.bf16.msra.mxu0 0
    %795 = vmatprep.subr.bf16.mxu0 0
    %796 = vmatpush2.bf16.msra.mxu0 0
    %797 = vmatprep.subr.bf16.mxu0 0
    %798 = vmatpush2.bf16.msra.mxu0 0
    %799 = vmatprep.subr.bf16.mxu0 0
    %800 = vmatpush2.bf16.msra.mxu0 0
    %801 = vmatprep.mubr.bf16.mxu0 0
    %802 = vmatmul.mubr.bf16.gmra.mxu0 %v727
    %v803 = vpop.f32.mrf.mxu0
    %v804 = vadd.f32 %v374, %v803
    %v805 = vpop.f32.mrf.mxu0
    %v806 = vpop.f32.mrf.mxu0
    %v807 = vpop.f32.mrf.mxu0
    %808 = vdwg.mxu0
    %v809 = vadd.f32 %v226, %v763
    %v810 = vxor.u32 %v809, 2147483648
    %v811 = vmul.f32 %v810, 1.442695
    %v812 = vpow.pop %v811
    %v813 = vadd.f32 %v812, 1.0
    %v814 = vrcp.pop %v813
    %v815 = vmul.f32 1.0, %v814
    %v816 = vadd.f32 %v228, %v765
    %v817 = vxor.u32 %v816, 2147483648
    %v818 = vmul.f32 %v817, 1.442695
    %v819 = vpow.pop %v818
    %v820 = vadd.f32 %v819, 1.0
    %v821 = vrcp.pop %v820
    %v822 = vmul.f32 1.0, %v821
    %v823 = vmul.f32 %v815, %v804
    %v824 = vadd.f32 %v297, %v823
    %v825 = vtanh.pop %v824
    %v826 = vsub.f32 1.0, %v822
    %v827 = vmul.f32 %v826, %v825
    %v828 = vmul.f32 %v822, %v726
    %v829 = vadd.f32 %v827, %v828
    %v830 = vsub.f32 %v829, %v726
    %832 = vset.pattern.permute.xlu0 0
    %833 = vperm.xlu0 %832, %v321
    %v834 = vpop.permute.xlu0 %833
    %v836 = vmul.f32 %v834, %v830
    %v837 = vadd.f32 %v726, %v836
    %v838 = vpack.c.bf16 %v837, %v837
    %839 = vmatprep.subr.bf16.mxu0 %v480
    %840 = vmatpush1.bf16.msra.mxu0 %v479
    %841 = vmatprep.subr.bf16.mxu0 %v477
    %842 = vmatpush1.bf16.msra.mxu0 %v476
    %843 = vmatprep.subr.bf16.mxu0 %v474
    %844 = vmatpush1.bf16.msra.mxu0 %v473
    %845 = vmatprep.subr.bf16.mxu0 %v471
    %846 = vmatpush1.bf16.msra.mxu0 %v470
    %847 = vmatprep.subr.bf16.mxu0 %v468
    %848 = vmatpush1.bf16.msra.mxu0 %v467
    %849 = vmatprep.subr.bf16.mxu0 %v465
    %850 = vmatpush1.bf16.msra.mxu0 %v464
    %851 = vmatprep.subr.bf16.mxu0 %v462
    %852 = vmatpush1.bf16.msra.mxu0 %v461
    %853 = vmatprep.subr.bf16.mxu0 %v459
    %854 = vmatpush1.bf16.msra.mxu0 %v458
    %855 = vmatprep.subr.bf16.mxu0 0
    %856 = vmatpush2.bf16.msra.mxu0 0
    %857 = vmatprep.subr.bf16.mxu0 0
    %858 = vmatpush2.bf16.msra.mxu0 0
    %859 = vmatprep.subr.bf16.mxu0 0
    %860 = vmatpush2.bf16.msra.mxu0 0
    %861 = vmatprep.subr.bf16.mxu0 0
    %862 = vmatpush2.bf16.msra.mxu0 0
    %863 = vmatprep.subr.bf16.mxu0 0
    %864 = vmatpush2.bf16.msra.mxu0 0
    %865 = vmatprep.subr.bf16.mxu0 0
    %866 = vmatpush2.bf16.msra.mxu0 0
    %867 = vmatprep.subr.bf16.mxu0 0
    %868 = vmatpush2.bf16.msra.mxu0 0
    %869 = vmatprep.subr.bf16.mxu0 0
    %870 = vmatpush2.bf16.msra.mxu0 0
    %871 = vmatprep.mubr.bf16.mxu0 0
    %872 = vmatmul.mubr.bf16.gmra.mxu0 %v838
    %v873 = vpop.f32.mrf.mxu0
    %v874 = vadd.f32 %v366, %v873
    %v875 = vpop.f32.mrf.mxu0
    %v876 = vadd.f32 %v370, %v875
    %v877 = vpop.f32.mrf.mxu0
    %v878 = vpop.f32.mrf.mxu0
    %879 = vdwg.mxu0
    %880 = vmatprep.subr.bf16.mxu0 0
    %881 = vmatpush1.bf16.msra.mxu0 %v481
    %882 = vmatprep.subr.bf16.mxu0 0
    %883 = vmatpush1.bf16.msra.mxu0 %v478
    %884 = vmatprep.subr.bf16.mxu0 0
    %885 = vmatpush1.bf16.msra.mxu0 %v475
    %886 = vmatprep.subr.bf16.mxu0 0
    %887 = vmatpush1.bf16.msra.mxu0 %v472
    %888 = vmatprep.subr.bf16.mxu0 0
    %889 = vmatpush1.bf16.msra.mxu0 %v469
    %890 = vmatprep.subr.bf16.mxu0 0
    %891 = vmatpush1.bf16.msra.mxu0 %v466
    %892 = vmatprep.subr.bf16.mxu0 0
    %893 = vmatpush1.bf16.msra.mxu0 %v463
    %894 = vmatprep.subr.bf16.mxu0 0
    %895 = vmatpush1.bf16.msra.mxu0 %v460
    %896 = vmatprep.subr.bf16.mxu0 0
    %897 = vmatpush2.bf16.msra.mxu0 0
    %898 = vmatprep.subr.bf16.mxu0 0
    %899 = vmatpush2.bf16.msra.mxu0 0
    %900 = vmatprep.subr.bf16.mxu0 0
    %901 = vmatpush2.bf16.msra.mxu0 0
    %902 = vmatprep.subr.bf16.mxu0 0
    %903 = vmatpush2.bf16.msra.mxu0 0
    %904 = vmatprep.subr.bf16.mxu0 0
    %905 = vmatpush2.bf16.msra.mxu0 0
    %906 = vmatprep.subr.bf16.mxu0 0
    %907 = vmatpush2.bf16.msra.mxu0 0
    %908 = vmatprep.subr.bf16.mxu0 0
    %909 = vmatpush2.bf16.msra.mxu0 0
    %910 = vmatprep.subr.bf16.mxu0 0
    %911 = vmatpush2.bf16.msra.mxu0 0
    %912 = vmatprep.mubr.bf16.mxu0 0
    %913 = vmatmul.mubr.bf16.gmra.mxu0 %v838
    %v914 = vpop.f32.mrf.mxu0
    %v915 = vadd.f32 %v374, %v914
    %v916 = vpop.f32.mrf.mxu0
    %v917 = vpop.f32.mrf.mxu0
    %v918 = vpop.f32.mrf.mxu0
    %919 = vdwg.mxu0
    %v920 = vadd.f32 %v230, %v874
    %v921 = vxor.u32 %v920, 2147483648
    %v922 = vmul.f32 %v921, 1.442695
    %v923 = vpow.pop %v922
    %v924 = vadd.f32 %v923, 1.0
    %v925 = vrcp.pop %v924
    %v926 = vmul.f32 1.0, %v925
    %v927 = vadd.f32 %v232, %v876
    %v928 = vxor.u32 %v927, 2147483648
    %v929 = vmul.f32 %v928, 1.442695
    %v930 = vpow.pop %v929
    %v931 = vadd.f32 %v930, 1.0
    %v932 = vrcp.pop %v931
    %v933 = vmul.f32 1.0, %v932
    %v934 = vmul.f32 %v926, %v915
    %v935 = vadd.f32 %v300, %v934
    %v936 = vtanh.pop %v935
    %v937 = vsub.f32 1.0, %v933
    %v938 = vmul.f32 %v937, %v936
    %v939 = vmul.f32 %v933, %v837
    %v940 = vadd.f32 %v938, %v939
    %v941 = vsub.f32 %v940, %v837
    %943 = vset.pattern.permute.xlu0 0
    %944 = vperm.xlu0 %943, %v322
    %v945 = vpop.permute.xlu0 %944
    %v947 = vmul.f32 %v945, %v941
    %v948 = vadd.f32 %v837, %v947
    %v949 = vpack.c.bf16 %v948, %v948
    %950 = vmatprep.subr.bf16.mxu0 %v480
    %951 = vmatpush1.bf16.msra.mxu0 %v479
    %952 = vmatprep.subr.bf16.mxu0 %v477
    %953 = vmatpush1.bf16.msra.mxu0 %v476
    %954 = vmatprep.subr.bf16.mxu0 %v474
    %955 = vmatpush1.bf16.msra.mxu0 %v473
    %956 = vmatprep.subr.bf16.mxu0 %v471
    %957 = vmatpush1.bf16.msra.mxu0 %v470
    %958 = vmatprep.subr.bf16.mxu0 %v468
    %959 = vmatpush1.bf16.msra.mxu0 %v467
    %960 = vmatprep.subr.bf16.mxu0 %v465
    %961 = vmatpush1.bf16.msra.mxu0 %v464
    %962 = vmatprep.subr.bf16.mxu0 %v462
    %963 = vmatpush1.bf16.msra.mxu0 %v461
    %964 = vmatprep.subr.bf16.mxu0 %v459
    %965 = vmatpush1.bf16.msra.mxu0 %v458
    %966 = vmatprep.subr.bf16.mxu0 0
    %967 = vmatpush2.bf16.msra.mxu0 0
    %968 = vmatprep.subr.bf16.mxu0 0
    %969 = vmatpush2.bf16.msra.mxu0 0
    %970 = vmatprep.subr.bf16.mxu0 0
    %971 = vmatpush2.bf16.msra.mxu0 0
    %972 = vmatprep.subr.bf16.mxu0 0
    %973 = vmatpush2.bf16.msra.mxu0 0
    %974 = vmatprep.subr.bf16.mxu0 0
    %975 = vmatpush2.bf16.msra.mxu0 0
    %976 = vmatprep.subr.bf16.mxu0 0
    %977 = vmatpush2.bf16.msra.mxu0 0
    %978 = vmatprep.subr.bf16.mxu0 0
    %979 = vmatpush2.bf16.msra.mxu0 0
    %980 = vmatprep.subr.bf16.mxu0 0
    %981 = vmatpush2.bf16.msra.mxu0 0
    %982 = vmatprep.mubr.bf16.mxu0 0
    %983 = vmatmul.mubr.bf16.gmra.mxu0 %v949
    %v984 = vpop.f32.mrf.mxu0
    %v985 = vadd.f32 %v366, %v984
    %v986 = vpop.f32.mrf.mxu0
    %v987 = vadd.f32 %v370, %v986
    %v988 = vpop.f32.mrf.mxu0
    %v989 = vpop.f32.mrf.mxu0
    %990 = vdwg.mxu0
    %991 = vmatprep.subr.bf16.mxu0 0
    %992 = vmatpush1.bf16.msra.mxu0 %v481
    %993 = vmatprep.subr.bf16.mxu0 0
    %994 = vmatpush1.bf16.msra.mxu0 %v478
    %995 = vmatprep.subr.bf16.mxu0 0
    %996 = vmatpush1.bf16.msra.mxu0 %v475
    %997 = vmatprep.subr.bf16.mxu0 0
    %998 = vmatpush1.bf16.msra.mxu0 %v472
    %999 = vmatprep.subr.bf16.mxu0 0
    %1000 = vmatpush1.bf16.msra.mxu0 %v469
    %1001 = vmatprep.subr.bf16.mxu0 0
    %1002 = vmatpush1.bf16.msra.mxu0 %v466
    %1003 = vmatprep.subr.bf16.mxu0 0
    %1004 = vmatpush1.bf16.msra.mxu0 %v463
    %1005 = vmatprep.subr.bf16.mxu0 0
    %1006 = vmatpush1.bf16.msra.mxu0 %v460
    %1007 = vmatprep.subr.bf16.mxu0 0
    %1008 = vmatpush2.bf16.msra.mxu0 0
    %1009 = vmatprep.subr.bf16.mxu0 0
    %1010 = vmatpush2.bf16.msra.mxu0 0
    %1011 = vmatprep.subr.bf16.mxu0 0
    %1012 = vmatpush2.bf16.msra.mxu0 0
    %1013 = vmatprep.subr.bf16.mxu0 0
    %1014 = vmatpush2.bf16.msra.mxu0 0
    %1015 = vmatprep.subr.bf16.mxu0 0
    %1016 = vmatpush2.bf16.msra.mxu0 0
    %1017 = vmatprep.subr.bf16.mxu0 0
    %1018 = vmatpush2.bf16.msra.mxu0 0
    %1019 = vmatprep.subr.bf16.mxu0 0
    %1020 = vmatpush2.bf16.msra.mxu0 0
    %1021 = vmatprep.subr.bf16.mxu0 0
    %1022 = vmatpush2.bf16.msra.mxu0 0
    %1023 = vmatprep.mubr.bf16.mxu0 0
    %1024 = vmatmul.mubr.bf16.gmra.mxu0 %v949
    %v1025 = vpop.f32.mrf.mxu0
    %v1026 = vadd.f32 %v374, %v1025
    %v1027 = vpop.f32.mrf.mxu0
    %v1028 = vpop.f32.mrf.mxu0
    %v1029 = vpop.f32.mrf.mxu0
    %1030 = vdwg.mxu0
    %v1031 = vadd.f32 %v236, %v985
    %v1032 = vxor.u32 %v1031, 2147483648
    %v1033 = vmul.f32 %v1032, 1.442695
    %v1034 = vpow.pop %v1033
    %v1035 = vadd.f32 %v1034, 1.0
    %v1036 = vrcp.pop %v1035
    %v1037 = vmul.f32 1.0, %v1036
    %v1038 = vadd.f32 %v238, %v987
    %v1039 = vxor.u32 %v1038, 2147483648
    %v1040 = vmul.f32 %v1039, 1.442695
    %v1041 = vpow.pop %v1040
    %v1042 = vadd.f32 %v1041, 1.0
    %v1043 = vrcp.pop %v1042
    %v1044 = vmul.f32 1.0, %v1043
    %v1045 = vmul.f32 %v1037, %v1026
    %v1046 = vadd.f32 %v305, %v1045
    %v1047 = vtanh.pop %v1046
    %v1048 = vsub.f32 1.0, %v1044
    %v1049 = vmul.f32 %v1048, %v1047
    %v1050 = vmul.f32 %v1044, %v948
    %v1051 = vadd.f32 %v1049, %v1050
    %v1052 = vsub.f32 %v1051, %v948
    %1054 = vset.pattern.permute.xlu0 0
    %1055 = vperm.xlu0 %1054, %v323
    %v1056 = vpop.permute.xlu0 %1055
    %v1058 = vmul.f32 %v1056, %v1052
    %v1059 = vadd.f32 %v948, %v1058
    %v1060 = vpack.c.bf16 %v1059, %v1059
    %1061 = vmatprep.subr.bf16.mxu0 %v480
    %1062 = vmatpush1.bf16.msra.mxu0 %v479
    %1063 = vmatprep.subr.bf16.mxu0 %v477
    %1064 = vmatpush1.bf16.msra.mxu0 %v476
    %1065 = vmatprep.subr.bf16.mxu0 %v474
    %1066 = vmatpush1.bf16.msra.mxu0 %v473
    %1067 = vmatprep.subr.bf16.mxu0 %v471
    %1068 = vmatpush1.bf16.msra.mxu0 %v470
    %1069 = vmatprep.subr.bf16.mxu0 %v468
    %1070 = vmatpush1.bf16.msra.mxu0 %v467
    %1071 = vmatprep.subr.bf16.mxu0 %v465
    %1072 = vmatpush1.bf16.msra.mxu0 %v464
    %1073 = vmatprep.subr.bf16.mxu0 %v462
    %1074 = vmatpush1.bf16.msra.mxu0 %v461
    %1075 = vmatprep.subr.bf16.mxu0 %v459
    %1076 = vmatpush1.bf16.msra.mxu0 %v458
    %1077 = vmatprep.subr.bf16.mxu0 0
    %1078 = vmatpush2.bf16.msra.mxu0 0
    %1079 = vmatprep.subr.bf16.mxu0 0
    %1080 = vmatpush2.bf16.msra.mxu0 0
    %1081 = vmatprep.subr.bf16.mxu0 0
    %1082 = vmatpush2.bf16.msra.mxu0 0
    %1083 = vmatprep.subr.bf16.mxu0 0
    %1084 = vmatpush2.bf16.msra.mxu0 0
    %1085 = vmatprep.subr.bf16.mxu0 0
    %1086 = vmatpush2.bf16.msra.mxu0 0
    %1087 = vmatprep.subr.bf16.mxu0 0
    %1088 = vmatpush2.bf16.msra.mxu0 0
    %1089 = vmatprep.subr.bf16.mxu0 0
    %1090 = vmatpush2.bf16.msra.mxu0 0
    %1091 = vmatprep.subr.bf16.mxu0 0
    %1092 = vmatpush2.bf16.msra.mxu0 0
    %1093 = vmatprep.mubr.bf16.mxu0 0
    %1094 = vmatmul.mubr.bf16.gmra.mxu0 %v1060
    %v1095 = vpop.f32.mrf.mxu0
    %v1096 = vadd.f32 %v366, %v1095
    %v1097 = vpop.f32.mrf.mxu0
    %v1098 = vadd.f32 %v370, %v1097
    %v1099 = vpop.f32.mrf.mxu0
    %v1100 = vpop.f32.mrf.mxu0
    %1101 = vdwg.mxu0
    %1102 = vmatprep.subr.bf16.mxu0 0
    %1103 = vmatpush1.bf16.msra.mxu0 %v481
    %1104 = vmatprep.subr.bf16.mxu0 0
    %1105 = vmatpush1.bf16.msra.mxu0 %v478
    %1106 = vmatprep.subr.bf16.mxu0 0
    %1107 = vmatpush1.bf16.msra.mxu0 %v475
    %1108 = vmatprep.subr.bf16.mxu0 0
    %1109 = vmatpush1.bf16.msra.mxu0 %v472
    %1110 = vmatprep.subr.bf16.mxu0 0
    %1111 = vmatpush1.bf16.msra.mxu0 %v469
    %1112 = vmatprep.subr.bf16.mxu0 0
    %1113 = vmatpush1.bf16.msra.mxu0 %v466
    %1114 = vmatprep.subr.bf16.mxu0 0
    %1115 = vmatpush1.bf16.msra.mxu0 %v463
    %1116 = vmatprep.subr.bf16.mxu0 0
    %1117 = vmatpush1.bf16.msra.mxu0 %v460
    %1118 = vmatprep.subr.bf16.mxu0 0
    %1119 = vmatpush2.bf16.msra.mxu0 0
    %1120 = vmatprep.subr.bf16.mxu0 0
    %1121 = vmatpush2.bf16.msra.mxu0 0
    %1122 = vmatprep.subr.bf16.mxu0 0
    %1123 = vmatpush2.bf16.msra.mxu0 0
    %1124 = vmatprep.subr.bf16.mxu0 0
    %1125 = vmatpush2.bf16.msra.mxu0 0
    %1126 = vmatprep.subr.bf16.mxu0 0
    %1127 = vmatpush2.bf16.msra.mxu0 0
    %1128 = vmatprep.subr.bf16.mxu0 0
    %1129 = vmatpush2.bf16.msra.mxu0 0
    %1130 = vmatprep.subr.bf16.mxu0 0
    %1131 = vmatpush2.bf16.msra.mxu0 0
    %1132 = vmatprep.subr.bf16.mxu0 0
    %1133 = vmatpush2.bf16.msra.mxu0 0
    %1134 = vmatprep.mubr.bf16.mxu0 0
    %1135 = vmatmul.mubr.bf16.gmra.mxu0 %v1060
    %v1136 = vpop.f32.mrf.mxu0
    %v1137 = vadd.f32 %v374, %v1136
    %v1138 = vpop.f32.mrf.mxu0
    %v1139 = vpop.f32.mrf.mxu0
    %v1140 = vpop.f32.mrf.mxu0
    %1141 = vdwg.mxu0
    %v1142 = vadd.f32 %v240, %v1096
    %v1143 = vxor.u32 %v1142, 2147483648
    %v1144 = vmul.f32 %v1143, 1.442695
    %v1145 = vpow.pop %v1144
    %v1146 = vadd.f32 %v1145, 1.0
    %v1147 = vrcp.pop %v1146
    %v1148 = vmul.f32 1.0, %v1147
    %v1149 = vadd.f32 %v242, %v1098
    %v1150 = vxor.u32 %v1149, 2147483648
    %v1151 = vmul.f32 %v1150, 1.442695
    %v1152 = vpow.pop %v1151
    %v1153 = vadd.f32 %v1152, 1.0
    %v1154 = vrcp.pop %v1153
    %v1155 = vmul.f32 1.0, %v1154
    %v1156 = vmul.f32 %v1148, %v1137
    %v1157 = vadd.f32 %v308, %v1156
    %v1158 = vtanh.pop %v1157
    %v1159 = vsub.f32 1.0, %v1155
    %v1160 = vmul.f32 %v1159, %v1158
    %v1161 = vmul.f32 %v1155, %v1059
    %v1162 = vadd.f32 %v1160, %v1161
    %v1163 = vsub.f32 %v1162, %v1059
    %1165 = vset.pattern.permute.xlu0 0
    %1166 = vperm.xlu0 %1165, %v324
    %v1167 = vpop.permute.xlu0 %1166
    %v1169 = vmul.f32 %v1167, %v1163
    %v1170 = vadd.f32 %v1059, %v1169
    %v1171 = vpack.c.bf16 %v1170, %v1170
    %1172 = vmatprep.subr.bf16.mxu0 %v480
    %1173 = vmatpush1.bf16.msra.mxu0 %v479
    %1174 = vmatprep.subr.bf16.mxu0 %v477
    %1175 = vmatpush1.bf16.msra.mxu0 %v476
    %1176 = vmatprep.subr.bf16.mxu0 %v474
    %1177 = vmatpush1.bf16.msra.mxu0 %v473
    %1178 = vmatprep.subr.bf16.mxu0 %v471
    %1179 = vmatpush1.bf16.msra.mxu0 %v470
    %1180 = vmatprep.subr.bf16.mxu0 %v468
    %1181 = vmatpush1.bf16.msra.mxu0 %v467
    %1182 = vmatprep.subr.bf16.mxu0 %v465
    %1183 = vmatpush1.bf16.msra.mxu0 %v464
    %1184 = vmatprep.subr.bf16.mxu0 %v462
    %1185 = vmatpush1.bf16.msra.mxu0 %v461
    %1186 = vmatprep.subr.bf16.mxu0 %v459
    %1187 = vmatpush1.bf16.msra.mxu0 %v458
    %1188 = vmatprep.subr.bf16.mxu0 0
    %1189 = vmatpush2.bf16.msra.mxu0 0
    %1190 = vmatprep.subr.bf16.mxu0 0
    %1191 = vmatpush2.bf16.msra.mxu0 0
    %1192 = vmatprep.subr.bf16.mxu0 0
    %1193 = vmatpush2.bf16.msra.mxu0 0
    %1194 = vmatprep.subr.bf16.mxu0 0
    %1195 = vmatpush2.bf16.msra.mxu0 0
    %1196 = vmatprep.subr.bf16.mxu0 0
    %1197 = vmatpush2.bf16.msra.mxu0 0
    %1198 = vmatprep.subr.bf16.mxu0 0
    %1199 = vmatpush2.bf16.msra.mxu0 0
    %1200 = vmatprep.subr.bf16.mxu0 0
    %1201 = vmatpush2.bf16.msra.mxu0 0
    %1202 = vmatprep.subr.bf16.mxu0 0
    %1203 = vmatpush2.bf16.msra.mxu0 0
    %1204 = vmatprep.mubr.bf16.mxu0 0
    %1205 = vmatmul.mubr.bf16.gmra.mxu0 %v1171
    %v1206 = vpop.f32.mrf.mxu0
    %v1207 = vadd.f32 %v366, %v1206
    %v1208 = vpop.f32.mrf.mxu0
    %v1209 = vadd.f32 %v370, %v1208
    %v1210 = vpop.f32.mrf.mxu0
    %v1211 = vpop.f32.mrf.mxu0
    %1212 = vdwg.mxu0
    %1213 = vmatprep.subr.bf16.mxu0 0
    %1214 = vmatpush1.bf16.msra.mxu0 %v481
    %1215 = vmatprep.subr.bf16.mxu0 0
    %1216 = vmatpush1.bf16.msra.mxu0 %v478
    %1217 = vmatprep.subr.bf16.mxu0 0
    %1218 = vmatpush1.bf16.msra.mxu0 %v475
    %1219 = vmatprep.subr.bf16.mxu0 0
    %1220 = vmatpush1.bf16.msra.mxu0 %v472
    %1221 = vmatprep.subr.bf16.mxu0 0
    %1222 = vmatpush1.bf16.msra.mxu0 %v469
    %1223 = vmatprep.subr.bf16.mxu0 0
    %1224 = vmatpush1.bf16.msra.mxu0 %v466
    %1225 = vmatprep.subr.bf16.mxu0 0
    %1226 = vmatpush1.bf16.msra.mxu0 %v463
    %1227 = vmatprep.subr.bf16.mxu0 0
    %1228 = vmatpush1.bf16.msra.mxu0 %v460
    %1229 = vmatprep.subr.bf16.mxu0 0
    %1230 = vmatpush2.bf16.msra.mxu0 0
    %1231 = vmatprep.subr.bf16.mxu0 0
    %1232 = vmatpush2.bf16.msra.mxu0 0
    %1233 = vmatprep.subr.bf16.mxu0 0
    %1234 = vmatpush2.bf16.msra.mxu0 0
    %1235 = vmatprep.subr.bf16.mxu0 0
    %1236 = vmatpush2.bf16.msra.mxu0 0
    %1237 = vmatprep.subr.bf16.mxu0 0
    %1238 = vmatpush2.bf16.msra.mxu0 0
    %1239 = vmatprep.subr.bf16.mxu0 0
    %1240 = vmatpush2.bf16.msra.mxu0 0
    %1241 = vmatprep.subr.bf16.mxu0 0
    %1242 = vmatpush2.bf16.msra.mxu0 0
    %1243 = vmatprep.subr.bf16.mxu0 0
    %1244 = vmatpush2.bf16.msra.mxu0 0
    %1245 = vmatprep.mubr.bf16.mxu0 0
    %1246 = vmatmul.mubr.bf16.gmra.mxu0 %v1171
    %v1247 = vpop.f32.mrf.mxu0
    %v1248 = vadd.f32 %v374, %v1247
    %v1249 = vpop.f32.mrf.mxu0
    %v1250 = vpop.f32.mrf.mxu0
    %v1251 = vpop.f32.mrf.mxu0
    %1252 = vdwg.mxu0
    %v1253 = vadd.f32 %v246, %v1207
    %v1254 = vxor.u32 %v1253, 2147483648
    %v1255 = vmul.f32 %v1254, 1.442695
    %v1256 = vpow.pop %v1255
    %v1257 = vadd.f32 %v1256, 1.0
    %v1258 = vrcp.pop %v1257
    %v1259 = vmul.f32 1.0, %v1258
    %v1260 = vadd.f32 %v248, %v1209
    %v1261 = vxor.u32 %v1260, 2147483648
    %v1262 = vmul.f32 %v1261, 1.442695
    %v1263 = vpow.pop %v1262
    %v1264 = vadd.f32 %v1263, 1.0
    %v1265 = vrcp.pop %v1264
    %v1266 = vmul.f32 1.0, %v1265
    %v1267 = vmul.f32 %v1259, %v1248
    %v1268 = vadd.f32 %v313, %v1267
    %v1269 = vtanh.pop %v1268
    %v1270 = vsub.f32 1.0, %v1266
    %v1271 = vmul.f32 %v1270, %v1269
    %v1272 = vmul.f32 %v1266, %v1170
    %v1273 = vadd.f32 %v1271, %v1272
    %v1274 = vsub.f32 %v1273, %v1170
    %1276 = vset.pattern.permute.xlu0 0
    %1277 = vperm.xlu0 %1276, %v325
    %v1278 = vpop.permute.xlu0 %1277
    %v1280 = vmul.f32 %v1278, %v1274
    %v1281 = vadd.f32 %v1170, %v1280
    %v1282 = vpack.c.bf16 %v1281, %v1281
    %1283 = vmatprep.subr.bf16.mxu0 %v480
    %1284 = vmatpush1.bf16.msra.mxu0 %v479
    %1285 = vmatprep.subr.bf16.mxu0 %v477
    %1286 = vmatpush1.bf16.msra.mxu0 %v476
    %1287 = vmatprep.subr.bf16.mxu0 %v474
    %1288 = vmatpush1.bf16.msra.mxu0 %v473
    %1289 = vmatprep.subr.bf16.mxu0 %v471
    %1290 = vmatpush1.bf16.msra.mxu0 %v470
    %1291 = vmatprep.subr.bf16.mxu0 %v468
    %1292 = vmatpush1.bf16.msra.mxu0 %v467
    %1293 = vmatprep.subr.bf16.mxu0 %v465
    %1294 = vmatpush1.bf16.msra.mxu0 %v464
    %1295 = vmatprep.subr.bf16.mxu0 %v462
    %1296 = vmatpush1.bf16.msra.mxu0 %v461
    %1297 = vmatprep.subr.bf16.mxu0 %v459
    %1298 = vmatpush1.bf16.msra.mxu0 %v458
    %1299 = vmatprep.subr.bf16.mxu0 0
    %1300 = vmatpush2.bf16.msra.mxu0 0
    %1301 = vmatprep.subr.bf16.mxu0 0
    %1302 = vmatpush2.bf16.msra.mxu0 0
    %1303 = vmatprep.subr.bf16.mxu0 0
    %1304 = vmatpush2.bf16.msra.mxu0 0
    %1305 = vmatprep.subr.bf16.mxu0 0
    %1306 = vmatpush2.bf16.msra.mxu0 0
    %1307 = vmatprep.subr.bf16.mxu0 0
    %1308 = vmatpush2.bf16.msra.mxu0 0
    %1309 = vmatprep.subr.bf16.mxu0 0
    %1310 = vmatpush2.bf16.msra.mxu0 0
    %1311 = vmatprep.subr.bf16.mxu0 0
    %1312 = vmatpush2.bf16.msra.mxu0 0
    %1313 = vmatprep.subr.bf16.mxu0 0
    %1314 = vmatpush2.bf16.msra.mxu0 0
    %1315 = vmatprep.mubr.bf16.mxu0 0
    %1316 = vmatmul.mubr.bf16.gmra.mxu0 %v1282
    %v1317 = vpop.f32.mrf.mxu0
    %v1318 = vadd.f32 %v366, %v1317
    %v1319 = vpop.f32.mrf.mxu0
    %v1320 = vadd.f32 %v370, %v1319
    %v1321 = vpop.f32.mrf.mxu0
    %v1322 = vpop.f32.mrf.mxu0
    %1323 = vdwg.mxu0
    %1324 = vmatprep.subr.bf16.mxu0 0
    %1325 = vmatpush1.bf16.msra.mxu0 %v481
    %1326 = vmatprep.subr.bf16.mxu0 0
    %1327 = vmatpush1.bf16.msra.mxu0 %v478
    %1328 = vmatprep.subr.bf16.mxu0 0
    %1329 = vmatpush1.bf16.msra.mxu0 %v475
    %1330 = vmatprep.subr.bf16.mxu0 0
    %1331 = vmatpush1.bf16.msra.mxu0 %v472
    %1332 = vmatprep.subr.bf16.mxu0 0
    %1333 = vmatpush1.bf16.msra.mxu0 %v469
    %1334 = vmatprep.subr.bf16.mxu0 0
    %1335 = vmatpush1.bf16.msra.mxu0 %v466
    %1336 = vmatprep.subr.bf16.mxu0 0
    %1337 = vmatpush1.bf16.msra.mxu0 %v463
    %1338 = vmatprep.subr.bf16.mxu0 0
    %1339 = vmatpush1.bf16.msra.mxu0 %v460
    %1340 = vmatprep.subr.bf16.mxu0 0
    %1341 = vmatpush2.bf16.msra.mxu0 0
    %1342 = vmatprep.subr.bf16.mxu0 0
    %1343 = vmatpush2.bf16.msra.mxu0 0
    %1344 = vmatprep.subr.bf16.mxu0 0
    %1345 = vmatpush2.bf16.msra.mxu0 0
    %1346 = vmatprep.subr.bf16.mxu0 0
    %1347 = vmatpush2.bf16.msra.mxu0 0
    %1348 = vmatprep.subr.bf16.mxu0 0
    %1349 = vmatpush2.bf16.msra.mxu0 0
    %1350 = vmatprep.subr.bf16.mxu0 0
    %1351 = vmatpush2.bf16.msra.mxu0 0
    %1352 = vmatprep.subr.bf16.mxu0 0
    %1353 = vmatpush2.bf16.msra.mxu0 0
    %1354 = vmatprep.subr.bf16.mxu0 0
    %1355 = vmatpush2.bf16.msra.mxu0 0
    %1356 = vmatprep.mubr.bf16.mxu0 0
    %1357 = vmatmul.mubr.bf16.gmra.mxu0 %v1282
    %v1358 = vpop.f32.mrf.mxu0
    %v1359 = vadd.f32 %v374, %v1358
    %v1360 = vpop.f32.mrf.mxu0
    %v1361 = vpop.f32.mrf.mxu0
    %v1362 = vpop.f32.mrf.mxu0
    %1363 = vdwg.mxu0
    %v1364 = vadd.f32 %v250, %v1318
    %v1365 = vxor.u32 %v1364, 2147483648
    %v1366 = vmul.f32 %v1365, 1.442695
    %v1367 = vpow.pop %v1366
    %v1368 = vadd.f32 %v1367, 1.0
    %v1369 = vrcp.pop %v1368
    %v1370 = vmul.f32 1.0, %v1369
    %v1371 = vadd.f32 %v252, %v1320
    %v1372 = vxor.u32 %v1371, 2147483648
    %v1373 = vmul.f32 %v1372, 1.442695
    %v1374 = vpow.pop %v1373
    %v1375 = vadd.f32 %v1374, 1.0
    %v1376 = vrcp.pop %v1375
    %v1377 = vmul.f32 1.0, %v1376
    %v1378 = vmul.f32 %v1370, %v1359
    %v1379 = vadd.f32 %v316, %v1378
    %v1380 = vtanh.pop %v1379
    %v1381 = vsub.f32 1.0, %v1377
    %v1382 = vmul.f32 %v1381, %v1380
    %v1383 = vmul.f32 %v1377, %v1281
    %v1384 = vadd.f32 %v1382, %v1383
    %v1385 = vsub.f32 %v1384, %v1281
    %1387 = vset.pattern.permute.xlu0 0
    %1388 = vperm.xlu0 %1387, %v326
    %v1389 = vpop.permute.xlu0 %1388
    %v1391 = vmul.f32 %v1389, %v1385
    %v1392 = vadd.f32 %v1281, %v1391
    %1393 = vst [vmem:[#allocation2] sm:$0xff] %v1392
    // Predicated region
    $region58: #{tpu_custom_call.1} parent=1 // pred_check
      %p1394 = pneg %p78
    $region59: #{tpu_custom_call.1} parent=1 // pred_check_branch
      %1396 = sbr.rel (%p1394) target = $region61
    $region60: #{tpu_custom_call.1} parent=1 // pred_region
      %v1397 = vld [vmem:[#allocation6] sm:$0xff]
      %v1398 = vld [vmem:[#allocation6 + $0x8] sm:$0xff]
      %v1399 = vld [vmem:[#allocation6 + $0x10] sm:$0xff]
      %v1400 = vld [vmem:[#allocation6 + $0x18] sm:$0xff]
      %v1401 = vld [vmem:[#allocation6 + $0x20] sm:$0xff]
      %v1402 = vld [vmem:[#allocation6 + $0x28] sm:$0xff]
      %v1403 = vld [vmem:[#allocation6 + $0x30] sm:$0xff]
      %v1404 = vld [vmem:[#allocation6 + $0x38] sm:$0xff]
      %v1405 = vld [vmem:[#allocation6 + $0x40] sm:$0xff]
      %v1406 = vld [vmem:[#allocation6 + $0x48] sm:$0xff]
      %v1407 = vld [vmem:[#allocation6 + $0x50] sm:$0xff]
      %v1408 = vld [vmem:[#allocation6 + $0x58] sm:$0xff]
      %v1409 = vld [vmem:[#allocation6 + $0x60] sm:$0xff]
      %v1410 = vld [vmem:[#allocation6 + $0x68] sm:$0xff]
      %v1411 = vld [vmem:[#allocation6 + $0x70] sm:$0xff]
      %v1412 = vld [vmem:[#allocation6 + $0x78] sm:$0xff]
      %v1413 = vld [vmem:[%s7] sm:$0x1]
      %v1415 = vlaneseq
      %v1416 = vshrl.u32 %v1415, 7
      %v1417 = vsub.s32 0, %v1416
      %v1418 = vrot.slane %v1413, %v1417
      %1420 = vmatprep.subr.mxu0 0.0
      %1421 = vmatpush1.msra.mxu0 %v1412
      %1422 = vmatprep.subr.mxu0 0.0
      %1423 = vmatpush1.msra.mxu0 %v1411
      %1424 = vmatprep.subr.mxu0 0.0
      %1425 = vmatpush1.msra.mxu0 %v1410
      %1426 = vmatprep.subr.mxu0 0.0
      %1427 = vmatpush1.msra.mxu0 %v1409
      %1428 = vmatprep.subr.mxu0 0.0
      %1429 = vmatpush1.msra.mxu0 %v1408
      %1430 = vmatprep.subr.mxu0 0.0
      %1431 = vmatpush1.msra.mxu0 %v1407
      %1432 = vmatprep.subr.mxu0 0.0
      %1433 = vmatpush1.msra.mxu0 %v1406
      %1434 = vmatprep.subr.mxu0 0.0
      %1435 = vmatpush1.msra.mxu0 %v1405
      %1436 = vmatprep.subr.mxu0 0.0
      %1437 = vmatpush1.msra.mxu0 %v1404
      %1438 = vmatprep.subr.mxu0 0.0
      %1439 = vmatpush1.msra.mxu0 %v1403
      %1440 = vmatprep.subr.mxu0 0.0
      %1441 = vmatpush1.msra.mxu0 %v1402
      %1442 = vmatprep.subr.mxu0 0.0
      %1443 = vmatpush1.msra.mxu0 %v1401
      %1444 = vmatprep.subr.mxu0 0.0
      %1445 = vmatpush1.msra.mxu0 %v1400
      %1446 = vmatprep.subr.mxu0 0.0
      %1447 = vmatpush1.msra.mxu0 %v1399
      %1448 = vmatprep.subr.mxu0 0.0
      %1449 = vmatpush1.msra.mxu0 %v1398
      %1450 = vmatprep.subr.mxu0 0.0
      %1451 = vmatpush1.msra.mxu0 %v1397
      %1452 = vmatprep.subr.mxu0 0.0
      %1453 = vmatpush2.msra.mxu0 0.0
      %1454 = vmatprep.subr.mxu0 0.0
      %1455 = vmatpush2.msra.mxu0 0.0
      %1456 = vmatprep.subr.mxu0 0.0
      %1457 = vmatpush2.msra.mxu0 0.0
      %1458 = vmatprep.subr.mxu0 0.0
      %1459 = vmatpush2.msra.mxu0 0.0
      %1460 = vmatprep.subr.mxu0 0.0
      %1461 = vmatpush2.msra.mxu0 0.0
      %1462 = vmatprep.subr.mxu0 0.0
      %1463 = vmatpush2.msra.mxu0 0.0
      %1464 = vmatprep.subr.mxu0 0.0
      %1465 = vmatpush2.msra.mxu0 0.0
      %1466 = vmatprep.subr.mxu0 0.0
      %1467 = vmatpush2.msra.mxu0 0.0
      %1468 = vmatprep.subr.mxu0 0.0
      %1469 = vmatpush2.msra.mxu0 0.0
      %1470 = vmatprep.subr.mxu0 0.0
      %1471 = vmatpush2.msra.mxu0 0.0
      %1472 = vmatprep.subr.mxu0 0.0
      %1473 = vmatpush2.msra.mxu0 0.0
      %1474 = vmatprep.subr.mxu0 0.0
      %1475 = vmatpush2.msra.mxu0 0.0
      %1476 = vmatprep.subr.mxu0 0.0
      %1477 = vmatpush2.msra.mxu0 0.0
      %1478 = vmatprep.subr.mxu0 0.0
      %1479 = vmatpush2.msra.mxu0 0.0
      %1480 = vmatprep.subr.mxu0 0.0
      %1481 = vmatpush2.msra.mxu0 0.0
      %1482 = vmatprep.subr.mxu0 0.0
      %1483 = vmatpush2.msra.mxu0 0.0
      %1484 = vmatprep.mubr.f32.mxu0 0.0
      %1485 = vmatmul.mubr.f32.gmra.mxu0 %v1392
      %v1486 = vpop.f32.mrf.mxu0
      %v1487 = vadd.f32 %v1418, %v1486
      %v1488 = vpop.f32.mrf.mxu0
      %1489 = vdwg.mxu0
      %v1490 = vmax.f32 %v1487, 0.0
      %v1491 = vld [vmem:[#allocation8] sm:$0xff]
      %v1492 = vld [vmem:[#allocation8 + $0x8] sm:$0xff]
      %v1493 = vld [vmem:[#allocation8 + $0x10] sm:$0xff]
      %v1494 = vld [vmem:[#allocation8 + $0x18] sm:$0xff]
      %v1495 = vld [vmem:[#allocation8 + $0x20] sm:$0xff]
      %v1496 = vld [vmem:[#allocation8 + $0x28] sm:$0xff]
      %v1497 = vld [vmem:[#allocation8 + $0x30] sm:$0xff]
      %v1498 = vld [vmem:[#allocation8 + $0x38] sm:$0xff]
      %v1499 = vld [vmem:[#allocation8 + $0x40] sm:$0xff]
      %v1500 = vld [vmem:[#allocation8 + $0x48] sm:$0xff]
      %v1501 = vld [vmem:[#allocation8 + $0x50] sm:$0xff]
      %v1502 = vld [vmem:[#allocation8 + $0x58] sm:$0xff]
      %v1503 = vld [vmem:[#allocation8 + $0x60] sm:$0xff]
      %v1504 = vld [vmem:[#allocation8 + $0x68] sm:$0xff]
      %v1505 = vld [vmem:[#allocation8 + $0x70] sm:$0xff]
      %v1506 = vld [vmem:[#allocation8 + $0x78] sm:$0xff]
      %v1507 = vld [vmem:[%s9] sm:$0x1]
      %v1509 = vlaneseq
      %v1510 = vshrl.u32 %v1509, 7
      %v1511 = vsub.s32 0, %v1510
      %v1512 = vrot.slane %v1507, %v1511
      %1514 = vmatprep.subr.mxu0 0.0
      %1515 = vmatpush1.msra.mxu0 %v1506
      %1516 = vmatprep.subr.mxu0 0.0
      %1517 = vmatpush1.msra.mxu0 %v1505
      %1518 = vmatprep.subr.mxu0 0.0
      %1519 = vmatpush1.msra.mxu0 %v1504
      %1520 = vmatprep.subr.mxu0 0.0
      %1521 = vmatpush1.msra.mxu0 %v1503
      %1522 = vmatprep.subr.mxu0 0.0
      %1523 = vmatpush1.msra.mxu0 %v1502
      %1524 = vmatprep.subr.mxu0 0.0
      %1525 = vmatpush1.msra.mxu0 %v1501
      %1526 = vmatprep.subr.mxu0 0.0
      %1527 = vmatpush1.msra.mxu0 %v1500
      %1528 = vmatprep.subr.mxu0 0.0
      %1529 = vmatpush1.msra.mxu0 %v1499
      %1530 = vmatprep.subr.mxu0 0.0
      %1531 = vmatpush1.msra.mxu0 %v1498
      %1532 = vmatprep.subr.mxu0 0.0
      %1533 = vmatpush1.msra.mxu0 %v1497
      %1534 = vmatprep.subr.mxu0 0.0
      %1535 = vmatpush1.msra.mxu0 %v1496
      %1536 = vmatprep.subr.mxu0 0.0
      %1537 = vmatpush1.msra.mxu0 %v1495
      %1538 = vmatprep.subr.mxu0 0.0
      %1539 = vmatpush1.msra.mxu0 %v1494
      %1540 = vmatprep.subr.mxu0 0.0
      %1541 = vmatpush1.msra.mxu0 %v1493
      %1542 = vmatprep.subr.mxu0 0.0
      %1543 = vmatpush1.msra.mxu0 %v1492
      %1544 = vmatprep.subr.mxu0 0.0
      %1545 = vmatpush1.msra.mxu0 %v1491
      %1546 = vmatprep.subr.mxu0 0.0
      %1547 = vmatpush2.msra.mxu0 0.0
      %1548 = vmatprep.subr.mxu0 0.0
      %1549 = vmatpush2.msra.mxu0 0.0
      %1550 = vmatprep.subr.mxu0 0.0
      %1551 = vmatpush2.msra.mxu0 0.0
      %1552 = vmatprep.subr.mxu0 0.0
      %1553 = vmatpush2.msra.mxu0 0.0
      %1554 = vmatprep.subr.mxu0 0.0
      %1555 = vmatpush2.msra.mxu0 0.0
      %1556 = vmatprep.subr.mxu0 0.0
      %1557 = vmatpush2.msra.mxu0 0.0
      %1558 = vmatprep.subr.mxu0 0.0
      %1559 = vmatpush2.msra.mxu0 0.0
      %1560 = vmatprep.subr.mxu0 0.0
      %1561 = vmatpush2.msra.mxu0 0.0
      %1562 = vmatprep.subr.mxu0 0.0
      %1563 = vmatpush2.msra.mxu0 0.0
      %1564 = vmatprep.subr.mxu0 0.0
      %1565 = vmatpush2.msra.mxu0 0.0
      %1566 = vmatprep.subr.mxu0 0.0
      %1567 = vmatpush2.msra.mxu0 0.0
      %1568 = vmatprep.subr.mxu0 0.0
      %1569 = vmatpush2.msra.mxu0 0.0
      %1570 = vmatprep.subr.mxu0 0.0
      %1571 = vmatpush2.msra.mxu0 0.0
      %1572 = vmatprep.subr.mxu0 0.0
      %1573 = vmatpush2.msra.mxu0 0.0
      %1574 = vmatprep.subr.mxu0 0.0
      %1575 = vmatpush2.msra.mxu0 0.0
      %1576 = vmatprep.subr.mxu0 0.0
      %1577 = vmatpush2.msra.mxu0 0.0
      %1578 = vmatprep.mubr.f32.mxu0 0.0
      %1579 = vmatmul.mubr.f32.gmra.mxu0 %v1490
      %v1580 = vpop.f32.mrf.mxu0
      %v1581 = vadd.f32 %v1512, %v1580
      %v1582 = vpop.f32.mrf.mxu0
      %1583 = vdwg.mxu0
      %v1584 = vxor.u32 %v1581, 2147483648
      %v1585 = vmul.f32 %v1584, 1.442695
      %v1586 = vpow.pop %v1585
      %v1587 = vadd.f32 %v1586, 1.0
      %v1588 = vrcp.pop %v1587
      %v1589 = vmul.f32 1.0, %v1588
      %v1590 = vmul.f32 %v1589, 6.0
      %1591 = vst [vmem:[#allocation9] sm:$0xff] %v1590
    $region61: #{tpu_custom_call.1} parent=1 // pred_fallthru
      _
    // Predicated region
    $region62: #{tpu_custom_call.1} parent=1 // pred_check
      _
    $region63: #{tpu_custom_call.1} parent=1 // pred_check_branch
      %1593 = sbr.rel (0) target = $region65
    $region64: #{tpu_custom_call.1} parent=1 // pred_region
      %s1595 = ssub.s32 128, 128
      %1596 = vsyncadd [#allocation5], %s1595
      %s1598 = sshll.u32 [#allocation9], 4
      %s1599 = int_to_ptr.vmem [resolvable:$true] %s1598
      %1601 = dma.vmem_to_hbm [thread:$0]  %s1599, 128, %s10, [#allocation5]
    $region65: #{tpu_custom_call.1} parent=1 // pred_fallthru
      _
    // Predicated region
    $region66: #{tpu_custom_call.1} parent=1 // pred_check
      _
    $region67: #{tpu_custom_call.1} parent=1 // pred_check_branch
      %1603 = sbr.rel (0) target = $region69
    $region68: #{tpu_custom_call.1} parent=1 // pred_region
      %1604 = dma.done [#allocation5], 128
    $region69: #{tpu_custom_call.1} parent=1 // pred_fallthru
      _
    %1605 = vsyncpa [#allocation4], 1
    %1606 = vsyncpa [#allocation7], 1
    %1607 = vsyncpa [#allocation5], 1

</llo_original>
